<compile_context>
chip_gen: v7x
topology: tpu7x:2x2x1
jax: 0.10.0
libtpu: 0.0.40
codegen_flags: <defaults>
</compile_context>

<pallas_src>
import jax
import jax.numpy as jnp
from jax.experimental import pallas as pl
from jax.experimental.pallas import tpu as pltpu

_LANE = 128
_SUBLANE = 8


def _round_up(x, m):
    return (x + m - 1) // m * m


def mlp_kernel(x_ref, w1_ref, b1_ref, w2_ref, b2_ref, w3_ref, b3_ref, o_ref):
    # Layer 1: bf16 matmul on the MXU, f32 accumulation, bias + ReLU in f32.
    h1 = jnp.dot(x_ref[...], w1_ref[...], preferred_element_type=jnp.float32)
    h1 = jnp.maximum(h1 + b1_ref[...], 0.0).astype(jnp.bfloat16)
    # Layer 2: same pattern.
    h2 = jnp.dot(h1, w2_ref[...], preferred_element_type=jnp.float32)
    h2 = jnp.maximum(h2 + b2_ref[...], 0.0).astype(jnp.bfloat16)
    # Layer 3 (no activation); output block is lane-dense (128 columns).
    out = jnp.dot(h2, w3_ref[...], preferred_element_type=jnp.float32)
    o_ref[...] = (out + b3_ref[...]).astype(o_ref.dtype)


def mlp_forward(x, params, *, tile_b=None):
    """x: [B, input_size] float32; params: w{1,2,3} as [in, out], b{1,2,3} as [1, out]."""
    B, in_dim = x.shape
    hid = params["w1"].shape[1]
    out_dim = params["w3"].shape[1]

    # Lane-align every feature dim with zero padding: 784->896, 128->128, 10->128.
    in_p = _round_up(in_dim, _LANE)
    hid_p = _round_up(hid, _LANE)
    out_p = _round_up(out_dim, _LANE)

    # Batch tile: as large as reasonable (<=256 keeps f32/bf16 intermediates
    # comfortably in vregs/VMEM), but keep >=2 grid steps when B allows so the
    # "parallel" batch axis can be split across v7x's two TensorCores.
    if tile_b is None:
        tile_b = max(_SUBLANE, min(256, _round_up(B, _SUBLANE) // 2))
        tile_b = _round_up(tile_b, _SUBLANE)
    B_p = _round_up(max(B, tile_b), tile_b)

    f32, bf16 = jnp.float32, jnp.bfloat16

    def pad2(a, rows, cols, dtype):
        r, c = a.shape
        return jnp.pad(a, ((0, rows - r), (0, cols - c))).astype(dtype)

    x_p = pad2(x, B_p, in_p, bf16)
    w1 = pad2(params["w1"], in_p, hid_p, bf16)
    w2 = pad2(params["w2"], hid_p, hid_p, bf16)
    w3 = pad2(params["w3"], hid_p, out_p, bf16)
    b1 = pad2(params["b1"], 1, hid_p, f32)
    b2 = pad2(params["b2"], 1, hid_p, f32)
    b3 = pad2(params["b3"], 1, out_p, f32)

    grid = (B_p // tile_b,)

    def whole(shape):
        # Constant block: same VMEM-resident tile for every grid step.
        return pl.BlockSpec(shape, lambda i: (0, 0))

    out_padded = pl.pallas_call(
        mlp_kernel,
        out_shape=jax.ShapeDtypeStruct((B_p, out_p), f32),
        grid_spec=pltpu.PrefetchScalarGridSpec(
            num_scalar_prefetch=0,
            grid=grid,
            in_specs=[
                pl.BlockSpec((tile_b, in_p), lambda i: (i, 0)),  # x tile
                whole((in_p, hid_p)),    # w1
                whole((1, hid_p)),       # b1
                whole((hid_p, hid_p)),   # w2
                whole((1, hid_p)),       # b2
                whole((hid_p, out_p)),   # w3
                whole((1, out_p)),       # b3
            ],
            out_specs=pl.BlockSpec((tile_b, out_p), lambda i: (i, 0)),
        ),
        compiler_params=pltpu.CompilerParams(
            dimension_semantics=("parallel",),
        ),
    )(x_p, w1, b1, w2, b2, w3, b3)

    return out_padded[:B, :out_dim]


def init_params(key, input_size=784, hidden_size=128, output_size=10):
    """Deterministic init mimicking nn.Linear (uniform +/- 1/sqrt(fan_in)).
    Weights stored as [in, out] (transposed vs PyTorch's [out, in])."""
    ks = jax.random.split(key, 6)

    def linear(kw, kb, fan_in, fan_out):
        bound = 1.0 / jnp.sqrt(fan_in)
        w = jax.random.uniform(kw, (fan_in, fan_out), jnp.float32, -bound, bound)
        b = jax.random.uniform(kb, (1, fan_out), jnp.float32, -bound, bound)
        return w, b

    w1, b1 = linear(ks[0], ks[1], input_size, hidden_size)
    w2, b2 = linear(ks[2], ks[3], hidden_size, hidden_size)
    w3, b3 = linear(ks[4], ks[5], hidden_size, output_size)
    return dict(w1=w1, b1=b1, w2=w2, b2=b2, w3=w3, b3=b3)


def _ref_bf16(x, params):
    """Pure-JAX reference mirroring the kernel math (bf16 operands, f32 accum)."""
    bf16, f32 = jnp.bfloat16, jnp.float32
    h = jnp.dot(x.astype(bf16), params["w1"].astype(bf16), preferred_element_type=f32)
    h = jnp.maximum(h + params["b1"], 0.0).astype(bf16)
    h = jnp.dot(h, params["w2"].astype(bf16), preferred_element_type=f32)
    h = jnp.maximum(h + params["b2"], 0.0).astype(bf16)
    out = jnp.dot(h, params["w3"].astype(bf16), preferred_element_type=f32)
    return out + params["b3"]


if __name__ == "__main__":
    key = jax.random.PRNGKey(0)
    k_x, k_p = jax.random.split(key)

    B, IN, HID, OUT = 256, 784, 128, 10
    x = jax.random.normal(k_x, (B, IN), jnp.float32)
    params = init_params(k_p, IN, HID, OUT)

    y = mlp_forward(x, params)          # auto: tile_b=128, grid=(2,)
    y = jax.block_until_ready(y)
    assert y.shape == (B, OUT)
    assert y.dtype == jnp.float32

    ref = _ref_bf16(x, params)
    assert jnp.allclose(y, ref, atol=1e-2, rtol=1e-2), float(jnp.max(jnp.abs(y - ref)))

    print("KERNEL_OK")
</pallas_src>

<mosaic_0001>
module attributes {stable_mosaic.version = 11 : i64} {
  func.func @mlp_kernel(%arg0: i32, %arg1: memref<128x896xbf16, #tpu.memory_space<vmem>>, %arg2: memref<896x128xbf16, #tpu.memory_space<vmem>>, %arg3: memref<1x128xf32, #tpu.memory_space<vmem>>, %arg4: memref<128x128xbf16, #tpu.memory_space<vmem>>, %arg5: memref<1x128xf32, #tpu.memory_space<vmem>>, %arg6: memref<128x128xbf16, #tpu.memory_space<vmem>>, %arg7: memref<1x128xf32, #tpu.memory_space<vmem>>, %arg8: memref<128x128xf32, #tpu.memory_space<vmem>>) attributes {dimension_semantics = [#tpu.dimension_semantics<parallel>], iteration_bounds = array<i64: 2>, scalar_prefetch = 0 : i64, scratch_operands = 0 : i64, tpu.core_type = #tpu.core_type<tc>, window_params = [{transform_indices = @transform_0, window_bounds = array<i64: 128, 896>}, {pipeline_mode = #tpu.pipeline_mode<synchronous>, transform_indices = @transform_1, window_bounds = array<i64: 896, 128>}, {pipeline_mode = #tpu.pipeline_mode<synchronous>, transform_indices = @transform_2, window_bounds = array<i64: 1, 128>}, {pipeline_mode = #tpu.pipeline_mode<synchronous>, transform_indices = @transform_3, window_bounds = array<i64: 128, 128>}, {pipeline_mode = #tpu.pipeline_mode<synchronous>, transform_indices = @transform_4, window_bounds = array<i64: 1, 128>}, {pipeline_mode = #tpu.pipeline_mode<synchronous>, transform_indices = @transform_5, window_bounds = array<i64: 128, 128>}, {pipeline_mode = #tpu.pipeline_mode<synchronous>, transform_indices = @transform_6, window_bounds = array<i64: 1, 128>}, {transform_indices = @transform_7, window_bounds = array<i64: 128, 128>}]} {
    %c0 = arith.constant 0 : index
    %c0_0 = arith.constant 0 : index
    %0 = vector.load %arg1[%c0, %c0_0] : memref<128x896xbf16, #tpu.memory_space<vmem>>, vector<128x896xbf16>
    %c0_1 = arith.constant 0 : index
    %c0_2 = arith.constant 0 : index
    %1 = vector.load %arg2[%c0_1, %c0_2] : memref<896x128xbf16, #tpu.memory_space<vmem>>, vector<896x128xbf16>
    %cst = arith.constant dense<0.000000e+00> : vector<128x128xf32>
    %2 = tpu.matmul %0, %1, %cst {dimension_numbers = #tpu.dot_dimension_numbers<[1], [0], [0], [1], [0, 0, 1, 1], [], []>} : vector<128x896xbf16>, vector<896x128xbf16>, vector<128x128xf32> -> vector<128x128xf32>
    %c0_3 = arith.constant 0 : index
    %c0_4 = arith.constant 0 : index
    %3 = vector.load %arg3[%c0_3, %c0_4] : memref<1x128xf32, #tpu.memory_space<vmem>>, vector<1x128xf32>
    %4 = vector.broadcast %3 : vector<1x128xf32> to vector<128x128xf32>
    %5 = arith.addf %2, %4 : vector<128x128xf32>
    %cst_5 = arith.constant 0.000000e+00 : f32
    %6 = vector.broadcast %cst_5 : f32 to vector<128x128xf32>
    %7 = arith.maximumf %5, %6 : vector<128x128xf32>
    %8 = arith.truncf %7 : vector<128x128xf32> to vector<128x128xbf16>
    %c0_6 = arith.constant 0 : index
    %c0_7 = arith.constant 0 : index
    %9 = vector.load %arg4[%c0_6, %c0_7] : memref<128x128xbf16, #tpu.memory_space<vmem>>, vector<128x128xbf16>
    %cst_8 = arith.constant dense<0.000000e+00> : vector<128x128xf32>
    %10 = tpu.matmul %8, %9, %cst_8 {dimension_numbers = #tpu.dot_dimension_numbers<[1], [0], [0], [1], [0, 0, 1, 1], [], []>} : vector<128x128xbf16>, vector<128x128xbf16>, vector<128x128xf32> -> vector<128x128xf32>
    %c0_9 = arith.constant 0 : index
    %c0_10 = arith.constant 0 : index
    %11 = vector.load %arg5[%c0_9, %c0_10] : memref<1x128xf32, #tpu.memory_space<vmem>>, vector<1x128xf32>
    %12 = vector.broadcast %11 : vector<1x128xf32> to vector<128x128xf32>
    %13 = arith.addf %10, %12 : vector<128x128xf32>
    %cst_11 = arith.constant 0.000000e+00 : f32
    %14 = vector.broadcast %cst_11 : f32 to vector<128x128xf32>
    %15 = arith.maximumf %13, %14 : vector<128x128xf32>
    %16 = arith.truncf %15 : vector<128x128xf32> to vector<128x128xbf16>
    %c0_12 = arith.constant 0 : index
    %c0_13 = arith.constant 0 : index
    %17 = vector.load %arg6[%c0_12, %c0_13] : memref<128x128xbf16, #tpu.memory_space<vmem>>, vector<128x128xbf16>
    %cst_14 = arith.constant dense<0.000000e+00> : vector<128x128xf32>
    %18 = tpu.matmul %16, %17, %cst_14 {dimension_numbers = #tpu.dot_dimension_numbers<[1], [0], [0], [1], [0, 0, 1, 1], [], []>} : vector<128x128xbf16>, vector<128x128xbf16>, vector<128x128xf32> -> vector<128x128xf32>
    %c0_15 = arith.constant 0 : index
    %c0_16 = arith.constant 0 : index
    %19 = vector.load %arg7[%c0_15, %c0_16] : memref<1x128xf32, #tpu.memory_space<vmem>>, vector<1x128xf32>
    %20 = vector.broadcast %19 : vector<1x128xf32> to vector<128x128xf32>
    %21 = arith.addf %18, %20 : vector<128x128xf32>
    %c0_17 = arith.constant 0 : index
    %c0_18 = arith.constant 0 : index
    %22 = vector.load %arg8[%c0_17, %c0_18] : memref<128x128xf32, #tpu.memory_space<vmem>>, vector<128x128xf32>
    tpu.vector_store %arg8[%c0_17, %c0_18], %21 {strides = array<i32>} : memref<128x128xf32, #tpu.memory_space<vmem>>, vector<128x128xf32>,
    return
  }
  func.func @transform_0(%arg0: i32) -> (i32, i32) {
    %c0_i32 = arith.constant 0 : i32
    %c0_i32_0 = arith.constant 0 : i32
    return %arg0, %c0_i32 : i32, i32
  }
  func.func @transform_1(%arg0: i32) -> (i32, i32) {
    %c0_i32 = arith.constant 0 : i32
    %c0_i32_0 = arith.constant 0 : i32
    %c0_i32_1 = arith.constant 0 : i32
    return %c0_i32, %c0_i32_0 : i32, i32
  }
  func.func @transform_2(%arg0: i32) -> (i32, i32) {
    %c0_i32 = arith.constant 0 : i32
    %c0_i32_0 = arith.constant 0 : i32
    %c0_i32_1 = arith.constant 0 : i32
    return %c0_i32, %c0_i32_0 : i32, i32
  }
  func.func @transform_3(%arg0: i32) -> (i32, i32) {
    %c0_i32 = arith.constant 0 : i32
    %c0_i32_0 = arith.constant 0 : i32
    %c0_i32_1 = arith.constant 0 : i32
    return %c0_i32, %c0_i32_0 : i32, i32
  }
  func.func @transform_4(%arg0: i32) -> (i32, i32) {
    %c0_i32 = arith.constant 0 : i32
    %c0_i32_0 = arith.constant 0 : i32
    %c0_i32_1 = arith.constant 0 : i32
    return %c0_i32, %c0_i32_0 : i32, i32
  }
  func.func @transform_5(%arg0: i32) -> (i32, i32) {
    %c0_i32 = arith.constant 0 : i32
    %c0_i32_0 = arith.constant 0 : i32
    %c0_i32_1 = arith.constant 0 : i32
    return %c0_i32, %c0_i32_0 : i32, i32
  }
  func.func @transform_6(%arg0: i32) -> (i32, i32) {
    %c0_i32 = arith.constant 0 : i32
    %c0_i32_0 = arith.constant 0 : i32
    %c0_i32_1 = arith.constant 0 : i32
    return %c0_i32, %c0_i32_0 : i32, i32
  }
  func.func @transform_7(%arg0: i32) -> (i32, i32) {
    %c0_i32 = arith.constant 0 : i32
    %c0_i32_0 = arith.constant 0 : i32
    return %arg0, %c0_i32 : i32, i32
  }
}

</mosaic_0001>

<llo_original>
// kernel: tpu_custom_call.1
$region0: #{tpu_custom_call.1}
  #allocation0 [shape = 'u32[]', space=smem, size = 0x4, offset = 0x4, fixed_abs, tag = 'smem constant byte address 0x4 - core index']
  #allocation1 [shape = 'u32[144,128]{1,0:T(1,128)}', space=vmem, size = 0x12000, scoped, tag = 'internal scratch']
  %s0 = inlined_call_operand.hbm [shape: bf16[256,896], index: 0, kind: input, shape index: {}]
  %s1 = inlined_call_operand.hbm [shape: bf16[896,128], index: 1, kind: input, shape index: {}]
  %s2 = inlined_call_operand.vmem [shape: f32[1,128], index: 2, kind: input, shape index: {}]
  %s3 = inlined_call_operand.hbm [shape: bf16[128,128], index: 3, kind: input, shape index: {}]
  %s4 = inlined_call_operand.vmem [shape: f32[1,128], index: 4, kind: input, shape index: {}]
  %s5 = inlined_call_operand.hbm [shape: bf16[128,128], index: 5, kind: input, shape index: {}]
  %s6 = inlined_call_operand.vmem [shape: f32[1,128], index: 6, kind: input, shape index: {}]
  %s7 = inlined_call_operand.hbm [shape: f32[256,128], index: 7, kind: output, shape index: {}]
  %s8 = sld [smem:[#allocation0]]
  $region77: #{tpu_custom_call.1} parent=0
    _
  %s10 = ssub.s32 1, %s8
  %s11 = scalar_select 0, %s10, %s8
  $region1: #{tpu_custom_call.1} parent=0
    #allocation2 [shape = 'u8[458752]{0}', space=vmem, size = 0x70000, scoped, tag = 'input window, operand 0']
    #allocation3 [shape = 's32[2]{0}', space=sflag, size = 0x8, scoped, tag = 'scoped memory for tpu_custom_call.1']
    #allocation4 [shape = 's32[2]{0}', space=sflag, size = 0x8, scoped, tag = 'scoped memory for tpu_custom_call.1']
    #allocation5 [shape = 'u8[229376]{0}', space=vmem, size = 0x38000, scoped, tag = 'input window, operand 1, single buffered']
    #allocation6 [shape = 's32[1]{0}', space=sflag, size = 0x4, scoped, tag = 'scoped memory for tpu_custom_call.1']
    #allocation7 [shape = 'u8[32768]{0}', space=vmem, size = 0x8000, scoped, tag = 'input window, operand 3, single buffered']
    #allocation8 [shape = 'u8[32768]{0}', space=vmem, size = 0x8000, scoped, tag = 'input window, operand 5, single buffered']
    #allocation9 [shape = 's32[1]{0}', space=sflag, size = 0x4, scoped, tag = 'scoped memory for tpu_custom_call.1']
    #allocation10 [shape = 'u8[131072]{0}', space=vmem, size = 0x20000, scoped, tag = 'output window, operand 0']
    %12 = vsyncpa [#allocation3], 0
    %s13 = scalar_lea.sflag [#allocation3], 1
    %14 = vsyncpa %s13, 0
    %15 = vsyncpa [#allocation6], 0
    %16 = vsyncpa [#allocation9], 0
    %17 = vsyncpa [#allocation4], 0
    %s18 = scalar_lea.sflag [#allocation4], 1
    %19 = vsyncpa %s18, 0
    loop: start=0, step=1, limit=4
    $region2: #{tpu_custom_call.1} parent=1 // loop_pre_header
      _
    $region3: #{tpu_custom_call.1} parent=1 // loop_header
      %s21 = sphi 0, %s25
      %p22 = scmp.ge.s32.totalorder %s21, 4
      %s31 = sphi 0, %s33
      %s34 = sphi 0, %s31
      %s35 = sphi 0, %s34
      %s51 = sphi 0, %s35
      %s55 = sphi 0, %s55
      %s57 = sphi 0, %s55
      %s58 = sphi 0, %s57
      %s72 = sphi 0, %s58
      %s76 = sphi 0, %s76
      %s78 = sphi 0, %s76
      %s79 = sphi 0, %s78
      %s93 = sphi 0, %s79
      %s97 = sphi 0, %s97
      %s99 = sphi 0, %s97
      %s100 = sphi 0, %s99
      %s114 = sphi 0, %s100
      %s118 = sphi 0, %s118
      %s120 = sphi 0, %s118
      %s121 = sphi 0, %s120
      %s135 = sphi 0, %s121
      %s139 = sphi 0, %s139
      %s141 = sphi 0, %s139
      %s142 = sphi 0, %s141
      %s156 = sphi 0, %s142
      %s160 = sphi 0, %s160
      %s162 = sphi 0, %s160
      %s163 = sphi 0, %s162
      %s177 = sphi 0, %s163
      %s183 = sphi 0, %s185
      %s186 = sphi 0, %s183
      %s187 = sphi 0, %s186
      %s203 = sphi 0, %s187
    $region4: #{tpu_custom_call.1} parent=1 // loop_header_branch
      %24 = sbr.rel (%p22) target = $region8
    $region5: #{tpu_custom_call.1} parent=1 // loop_body
      %s26 = ssub.s32 %s21, 1
      %s27 = ssub.s32 %s21, 2
      %s28 = sadd.s32 %s21, 1
      %s29 = ssub.s32 %s21, %s28
      %p30 = scmp.eq.s32.totalorder %s29, 0
      %s32 = sadd.s32 %s31, 1
      %s33 = scalar_select %p30, %s31, %s32
      %p36 = pneg %p30
      %p37 = scmp.eq.s32.totalorder %s21, 1
      %p38 = por %p36, %p37
      %p39 = scmp.ne.s32.totalorder %s31, %s34
      %p40 = scmp.eq.s32.totalorder %s21, 0
      %p41 = por %p39, %p40
      %p42 = scmp.ne.s32.totalorder %s31, %s34
      %p43 = scmp.eq.s32.totalorder %s26, 1
      %p44 = por %p42, %p43
      %p45 = scmp.ne.s32.totalorder %s34, %s35
      %p46 = scmp.eq.s32.totalorder %s26, 0
      %p47 = por %p45, %p46
      %p48 = scmp.ne.s32.totalorder %s34, %s35
      %p49 = scmp.eq.s32.totalorder %s27, 1
      %p50 = por %p48, %p49
      %p52 = scmp.ne.s32.totalorder %s35, %s51
      %p53 = scmp.eq.s32.totalorder %s27, 0
      %p54 = por %p52, %p53
      %s56 = sadd.s32 %s55, 1
      %p59 = scmp.eq.s32.totalorder %s21, 1
      %p60 = scmp.ne.s32.totalorder %s55, %s57
      %p61 = scmp.eq.s32.totalorder %s21, 0
      %p62 = por %p60, %p61
      %p63 = scmp.ne.s32.totalorder %s55, %s57
      %p64 = scmp.eq.s32.totalorder %s26, 1
      %p65 = por %p63, %p64
      %p66 = scmp.ne.s32.totalorder %s57, %s58
      %p67 = scmp.eq.s32.totalorder %s26, 0
      %p68 = por %p66, %p67
      %p69 = scmp.ne.s32.totalorder %s57, %s58
      %p70 = scmp.eq.s32.totalorder %s27, 1
      %p71 = por %p69, %p70
      %p73 = scmp.ne.s32.totalorder %s58, %s72
      %p74 = scmp.eq.s32.totalorder %s27, 0
      %p75 = por %p73, %p74
      %s77 = sadd.s32 %s76, 1
      %p80 = scmp.eq.s32.totalorder %s21, 1
      %p81 = scmp.ne.s32.totalorder %s76, %s78
      %p82 = scmp.eq.s32.totalorder %s21, 0
      %p83 = por %p81, %p82
      %p84 = scmp.ne.s32.totalorder %s76, %s78
      %p85 = scmp.eq.s32.totalorder %s26, 1
      %p86 = por %p84, %p85
      %p87 = scmp.ne.s32.totalorder %s78, %s79
      %p88 = scmp.eq.s32.totalorder %s26, 0
      %p89 = por %p87, %p88
      %p90 = scmp.ne.s32.totalorder %s78, %s79
      %p91 = scmp.eq.s32.totalorder %s27, 1
      %p92 = por %p90, %p91
      %p94 = scmp.ne.s32.totalorder %s79, %s93
      %p95 = scmp.eq.s32.totalorder %s27, 0
      %p96 = por %p94, %p95
      %s98 = sadd.s32 %s97, 1
      %p101 = scmp.eq.s32.totalorder %s21, 1
      %p102 = scmp.ne.s32.totalorder %s97, %s99
      %p103 = scmp.eq.s32.totalorder %s21, 0
      %p104 = por %p102, %p103
      %p105 = scmp.ne.s32.totalorder %s97, %s99
      %p106 = scmp.eq.s32.totalorder %s26, 1
      %p107 = por %p105, %p106
      %p108 = scmp.ne.s32.totalorder %s99, %s100
      %p109 = scmp.eq.s32.totalorder %s26, 0
      %p110 = por %p108, %p109
      %p111 = scmp.ne.s32.totalorder %s99, %s100
      %p112 = scmp.eq.s32.totalorder %s27, 1
      %p113 = por %p111, %p112
      %p115 = scmp.ne.s32.totalorder %s100, %s114
      %p116 = scmp.eq.s32.totalorder %s27, 0
      %p117 = por %p115, %p116
      %s119 = sadd.s32 %s118, 1
      %p122 = scmp.eq.s32.totalorder %s21, 1
      %p123 = scmp.ne.s32.totalorder %s118, %s120
      %p124 = scmp.eq.s32.totalorder %s21, 0
      %p125 = por %p123, %p124
      %p126 = scmp.ne.s32.totalorder %s118, %s120
      %p127 = scmp.eq.s32.totalorder %s26, 1
      %p128 = por %p126, %p127
      %p129 = scmp.ne.s32.totalorder %s120, %s121
      %p130 = scmp.eq.s32.totalorder %s26, 0
      %p131 = por %p129, %p130
      %p132 = scmp.ne.s32.totalorder %s120, %s121
      %p133 = scmp.eq.s32.totalorder %s27, 1
      %p134 = por %p132, %p133
      %p136 = scmp.ne.s32.totalorder %s121, %s135
      %p137 = scmp.eq.s32.totalorder %s27, 0
      %p138 = por %p136, %p137
      %s140 = sadd.s32 %s139, 1
      %p143 = scmp.eq.s32.totalorder %s21, 1
      %p144 = scmp.ne.s32.totalorder %s139, %s141
      %p145 = scmp.eq.s32.totalorder %s21, 0
      %p146 = por %p144, %p145
      %p147 = scmp.ne.s32.totalorder %s139, %s141
      %p148 = scmp.eq.s32.totalorder %s26, 1
      %p149 = por %p147, %p148
      %p150 = scmp.ne.s32.totalorder %s141, %s142
      %p151 = scmp.eq.s32.totalorder %s26, 0
      %p152 = por %p150, %p151
      %p153 = scmp.ne.s32.totalorder %s141, %s142
      %p154 = scmp.eq.s32.totalorder %s27, 1
      %p155 = por %p153, %p154
      %p157 = scmp.ne.s32.totalorder %s142, %s156
      %p158 = scmp.eq.s32.totalorder %s27, 0
      %p159 = por %p157, %p158
      %s161 = sadd.s32 %s160, 1
      %p164 = scmp.eq.s32.totalorder %s21, 1
      %p165 = scmp.ne.s32.totalorder %s160, %s162
      %p166 = scmp.eq.s32.totalorder %s21, 0
      %p167 = por %p165, %p166
      %p168 = scmp.ne.s32.totalorder %s160, %s162
      %p169 = scmp.eq.s32.totalorder %s26, 1
      %p170 = por %p168, %p169
      %p171 = scmp.ne.s32.totalorder %s162, %s163
      %p172 = scmp.eq.s32.totalorder %s26, 0
      %p173 = por %p171, %p172
      %p174 = scmp.ne.s32.totalorder %s162, %s163
      %p175 = scmp.eq.s32.totalorder %s27, 1
      %p176 = por %p174, %p175
      %p178 = scmp.ne.s32.totalorder %s163, %s177
      %p179 = scmp.eq.s32.totalorder %s27, 0
      %p180 = por %p178, %p179
      %s181 = ssub.s32 %s21, %s28
      %p182 = scmp.eq.s32.totalorder %s181, 0
      %s184 = sadd.s32 %s183, 1
      %s185 = scalar_select %p182, %s183, %s184
      %p188 = pneg %p182
      %p189 = scmp.eq.s32.totalorder %s21, 1
      %p190 = por %p188, %p189
      %p191 = scmp.ne.s32.totalorder %s183, %s186
      %p192 = scmp.eq.s32.totalorder %s21, 0
      %p193 = por %p191, %p192
      %p194 = scmp.ne.s32.totalorder %s183, %s186
      %p195 = scmp.eq.s32.totalorder %s26, 1
      %p196 = por %p194, %p195
      %p197 = scmp.ne.s32.totalorder %s186, %s187
      %p198 = scmp.eq.s32.totalorder %s26, 0
      %p199 = por %p197, %p198
      %p200 = scmp.ne.s32.totalorder %s186, %s187
      %p201 = scmp.eq.s32.totalorder %s27, 1
      %p202 = por %p200, %p201
      %p204 = scmp.ne.s32.totalorder %s187, %s203
      %p205 = scmp.eq.s32.totalorder %s27, 0
      %p206 = por %p204, %p205
      %p207 = scmp.le.s32.totalorder 1, %s21
      %p208 = scmp.lt.s32.totalorder %s21, 3
      %p209 = pnand %p207, %p208
      %p210 = pneg %p209
      // Predicated region
      $region9: #{tpu_custom_call.1} parent=5 // pred_check
        _
      $region10: #{tpu_custom_call.1} parent=5 // pred_check_branch
        %212 = sbr.rel (%p209) target = $region12
      $region11: #{tpu_custom_call.1} parent=5 // pred_region
        %s213 = ssub.s32 %s21, 1
        // Predicated region
        $region13: #{tpu_custom_call.1} parent=11 // pred_check
          %p214 = pneg %p68
        $region14: #{tpu_custom_call.1} parent=11 // pred_check_branch
          %216 = sbr.rel (%p214) target = $region16
        $region15: #{tpu_custom_call.1} parent=11 // pred_region
          %s218 = ssub.s32 7168, 7168
          %219 = vsyncadd [#allocation6], %s218
          %s220 = sshll.u32 [#allocation5], 4
          %s221 = int_to_ptr.vmem [resolvable:$true] %s220
          %226 = dma.hbm_to_vmem [thread:$0]  %s1, 7168, %s221, [#allocation6], 64, 64, 4
        $region16: #{tpu_custom_call.1} parent=11 // pred_fallthru
          _
        // Predicated region
        $region17: #{tpu_custom_call.1} parent=11 // pred_check
          %p227 = pneg %p89
        $region18: #{tpu_custom_call.1} parent=11 // pred_check_branch
          %229 = sbr.rel (%p227) target = $region20
        $region19: #{tpu_custom_call.1} parent=11 // pred_region
          _
        $region20: #{tpu_custom_call.1} parent=11 // pred_fallthru
          _
        // Predicated region
        $region21: #{tpu_custom_call.1} parent=11 // pred_check
          %p230 = pneg %p110
        $region22: #{tpu_custom_call.1} parent=11 // pred_check_branch
          %232 = sbr.rel (%p230) target = $region24
        $region23: #{tpu_custom_call.1} parent=11 // pred_region
          %s234 = ssub.s32 1024, 1024
          %235 = vsyncadd [#allocation6], %s234
          %s236 = sshll.u32 [#allocation7], 4
          %s237 = int_to_ptr.vmem [resolvable:$true] %s236
          %242 = dma.hbm_to_vmem [thread:$0]  %s3, 1024, %s237, [#allocation6], 64, 64, 4
        $region24: #{tpu_custom_call.1} parent=11 // pred_fallthru
          _
        // Predicated region
        $region25: #{tpu_custom_call.1} parent=11 // pred_check
          %p243 = pneg %p131
        $region26: #{tpu_custom_call.1} parent=11 // pred_check_branch
          %245 = sbr.rel (%p243) target = $region28
        $region27: #{tpu_custom_call.1} parent=11 // pred_region
          _
        $region28: #{tpu_custom_call.1} parent=11 // pred_fallthru
          _
        // Predicated region
        $region29: #{tpu_custom_call.1} parent=11 // pred_check
          %p246 = pneg %p152
        $region30: #{tpu_custom_call.1} parent=11 // pred_check_branch
          %248 = sbr.rel (%p246) target = $region32
        $region31: #{tpu_custom_call.1} parent=11 // pred_region
          %s250 = ssub.s32 1024, 1024
          %251 = vsyncadd [#allocation9], %s250
          %s252 = sshll.u32 [#allocation8], 4
          %s253 = int_to_ptr.vmem [resolvable:$true] %s252
          %258 = dma.hbm_to_vmem [thread:$0]  %s5, 1024, %s253, [#allocation9], 64, 64, 4
        $region32: #{tpu_custom_call.1} parent=11 // pred_fallthru
          _
        // Predicated region
        $region33: #{tpu_custom_call.1} parent=11 // pred_check
          %p259 = pneg %p173
        $region34: #{tpu_custom_call.1} parent=11 // pred_check_branch
          %261 = sbr.rel (%p259) target = $region36
        $region35: #{tpu_custom_call.1} parent=11 // pred_region
          _
        $region36: #{tpu_custom_call.1} parent=11 // pred_fallthru
          _
      $region12: #{tpu_custom_call.1} parent=5 // pred_fallthru
        _
      %p262 = scmp.lt.s32.totalorder %s21, 2
      // Predicated region
      $region37: #{tpu_custom_call.1} parent=5 // pred_check
        %p263 = pneg %p262
      $region38: #{tpu_custom_call.1} parent=5 // pred_check_branch
        %265 = sbr.rel (%p263) target = $region40
      $region39: #{tpu_custom_call.1} parent=5 // pred_region
        // Predicated region
        $region41: #{tpu_custom_call.1} parent=39 // pred_check
          %p266 = pneg %p41
        $region42: #{tpu_custom_call.1} parent=39 // pred_check_branch
          %268 = sbr.rel (%p266) target = $region44
        $region43: #{tpu_custom_call.1} parent=39 // pred_region
          %s269 = sand.u32 %s31, 1
          %s270 = scalar_lea.sflag [#allocation3], %s269
          %s271 = sand.u32 %s31, 1
          %s272 = smul.addr %s271, 448
          %s273 = scalar_lea.vmem [#allocation2], %s272
          %s274 = smul.u32 16, %s21
          %s276 = ssub.s32 7168, 7168
          %277 = vsyncadd %s270, %s276
          %s278 = smul.addr %s274, 7
          %s279 = smul.addr %s278, 64
          %s280 = scalar_lea.hbm %s0, %s279
          %s281 = sshll.u32 %s273, 4
          %s282 = int_to_ptr.vmem [resolvable:$true] %s281
          %287 = dma.hbm_to_vmem [thread:$0]  %s280, 7168, %s282, %s270, 448, 448, 28
        $region44: #{tpu_custom_call.1} parent=39 // pred_fallthru
          _
      $region40: #{tpu_custom_call.1} parent=5 // pred_fallthru
        _
      %p288 = scmp.le.s32.totalorder 1, %s21
      %p289 = scmp.lt.s32.totalorder %s21, 3
      %p290 = pnand %p288, %p289
      %p291 = pneg %p290
      // Predicated region
      $region45: #{tpu_custom_call.1} parent=5 // pred_check
        _
      $region46: #{tpu_custom_call.1} parent=5 // pred_check_branch
        %293 = sbr.rel (%p290) target = $region48
      $region47: #{tpu_custom_call.1} parent=5 // pred_region
        %s294 = ssub.s32 %s21, 1
        %s295 = sand.u32 %s34, 1
        %s296 = scalar_lea.sflag [#allocation3], %s295
        %s297 = sand.u32 %s34, 1
        %s298 = smul.addr %s297, 448
        %s299 = scalar_lea.vmem [#allocation2], %s298
        // Predicated region
        $region49: #{tpu_custom_call.1} parent=47 // pred_check
          %p300 = pneg %p47
        $region50: #{tpu_custom_call.1} parent=47 // pred_check_branch
          %302 = sbr.rel (%p300) target = $region52
        $region51: #{tpu_custom_call.1} parent=47 // pred_region
          %303 = dma.done %s296, 7168
        $region52: #{tpu_custom_call.1} parent=47 // pred_fallthru
          _
        // Predicated region
        $region53: #{tpu_custom_call.1} parent=47 // pred_check
          %p304 = pneg %p68
        $region54: #{tpu_custom_call.1} parent=47 // pred_check_branch
          %306 = sbr.rel (%p304) target = $region56
        $region55: #{tpu_custom_call.1} parent=47 // pred_region
          %307 = dma.done [#allocation6], 7168
        $region56: #{tpu_custom_call.1} parent=47 // pred_fallthru
          _
        // Predicated region
        $region57: #{tpu_custom_call.1} parent=47 // pred_check
          %p308 = pneg %p110
        $region58: #{tpu_custom_call.1} parent=47 // pred_check_branch
          %310 = sbr.rel (%p308) target = $region60
        $region59: #{tpu_custom_call.1} parent=47 // pred_region
          %311 = dma.done [#allocation6], 1024
        $region60: #{tpu_custom_call.1} parent=47 // pred_fallthru
          _
        // Predicated region
        $region61: #{tpu_custom_call.1} parent=47 // pred_check
          %p312 = pneg %p152
        $region62: #{tpu_custom_call.1} parent=47 // pred_check_branch
          %314 = sbr.rel (%p312) target = $region64
        $region63: #{tpu_custom_call.1} parent=47 // pred_region
          %315 = dma.done [#allocation9], 1024
        $region64: #{tpu_custom_call.1} parent=47 // pred_fallthru
          _
        %s316 = sand.u32 %s34, 1
        %s317 = scalar_lea.sflag [#allocation3], %s316
        %s318 = sand.u32 %s34, 1
        %s319 = smul.addr %s318, 448
        %s320 = scalar_lea.vmem [#allocation2], %s319
        %p321 = pneg %p47
        %p322 = pneg %p44
        %p323 = pneg %p68
        %p324 = pneg %p65
        %p325 = pneg %p89
        %p326 = pneg %p86
        %p327 = pneg %p110
        %p328 = pneg %p107
        %p329 = pneg %p131
        %p330 = pneg %p128
        %p331 = pneg %p152
        %p332 = pneg %p149
        %p333 = pneg %p173
        %p334 = pneg %p170
        %p335 = pneg %p199
        %p336 = pneg %p196
        %s337 = sand.u32 %s186, 1
        %s338 = scalar_lea.sflag [#allocation4], %s337
        %s339 = sand.u32 %s186, 1
        %s340 = smul.addr %s339, 128
        %s341 = scalar_lea.vmem [#allocation10], %s340
        %s342 = smul.u32 16, %s26
        %s343 = smul.u32 16, %s26
        %v345 = vld [vmem:[%s299] sm:$0xff]
        %v346 = vld [vmem:[%s299 + $0x8] sm:$0xff]
        %v347 = vld [vmem:[%s299 + $0x10] sm:$0xff]
        %v348 = vld [vmem:[%s299 + $0x18] sm:$0xf]
        %v349 = vld [vmem:[%s299 + $0x1c] sm:$0xff]
        %v350 = vld [vmem:[%s299 + $0x24] sm:$0xff]
        %v351 = vld [vmem:[%s299 + $0x2c] sm:$0xff]
        %v352 = vld [vmem:[%s299 + $0x34] sm:$0xf]
        %v353 = vld [vmem:[%s299 + $0x38] sm:$0xff]
        %v354 = vld [vmem:[%s299 + $0x40] sm:$0xff]
        %v355 = vld [vmem:[%s299 + $0x48] sm:$0xff]
        %v356 = vld [vmem:[%s299 + $0x50] sm:$0xf]
        %v357 = vld [vmem:[%s299 + $0x54] sm:$0xff]
        %v358 = vld [vmem:[%s299 + $0x5c] sm:$0xff]
        %v359 = vld [vmem:[%s299 + $0x64] sm:$0xff]
        %v360 = vld [vmem:[%s299 + $0x6c] sm:$0xf]
        %v361 = vld [vmem:[%s299 + $0x70] sm:$0xff]
        %v362 = vld [vmem:[%s299 + $0x78] sm:$0xff]
        %v363 = vld [vmem:[%s299 + $0x80] sm:$0xff]
        %v364 = vld [vmem:[%s299 + $0x88] sm:$0xf]
        %v365 = vld [vmem:[%s299 + $0x8c] sm:$0xff]
        %v366 = vld [vmem:[%s299 + $0x94] sm:$0xff]
        %v367 = vld [vmem:[%s299 + $0x9c] sm:$0xff]
        %v368 = vld [vmem:[%s299 + $0xa4] sm:$0xf]
        %v369 = vld [vmem:[%s299 + $0xa8] sm:$0xff]
        %v370 = vld [vmem:[%s299 + $0xb0] sm:$0xff]
        %v371 = vld [vmem:[%s299 + $0xb8] sm:$0xff]
        %v372 = vld [vmem:[%s299 + $0xc0] sm:$0xf]
        %v373 = vld [vmem:[%s299 + $0xc4] sm:$0xff]
        %v374 = vld [vmem:[%s299 + $0xcc] sm:$0xff]
        %v375 = vld [vmem:[%s299 + $0xd4] sm:$0xff]
        %v376 = vld [vmem:[%s299 + $0xdc] sm:$0xf]
        %v377 = vld [vmem:[%s299 + $0xe0] sm:$0xff]
        %v378 = vld [vmem:[%s299 + $0xe8] sm:$0xff]
        %v379 = vld [vmem:[%s299 + $0xf0] sm:$0xff]
        %v380 = vld [vmem:[%s299 + $0xf8] sm:$0xf]
        %v381 = vld [vmem:[%s299 + $0xfc] sm:$0xff]
        %v382 = vld [vmem:[%s299 + $0x104] sm:$0xff]
        %v383 = vld [vmem:[%s299 + $0x10c] sm:$0xff]
        %v384 = vld [vmem:[%s299 + $0x114] sm:$0xf]
        %v385 = vld [vmem:[%s299 + $0x118] sm:$0xff]
        %v386 = vld [vmem:[%s299 + $0x120] sm:$0xff]
        %v387 = vld [vmem:[%s299 + $0x128] sm:$0xff]
        %v388 = vld [vmem:[%s299 + $0x130] sm:$0xf]
        %v389 = vld [vmem:[%s299 + $0x134] sm:$0xff]
        %v390 = vld [vmem:[%s299 + $0x13c] sm:$0xff]
        %v391 = vld [vmem:[%s299 + $0x144] sm:$0xff]
        %v392 = vld [vmem:[%s299 + $0x14c] sm:$0xf]
        %v393 = vld [vmem:[%s299 + $0x150] sm:$0xff]
        %v394 = vld [vmem:[%s299 + $0x158] sm:$0xff]
        %v395 = vld [vmem:[%s299 + $0x160] sm:$0xff]
        %v396 = vld [vmem:[%s299 + $0x168] sm:$0xf]
        %v397 = vld [vmem:[%s299 + $0x16c] sm:$0xff]
        %v398 = vld [vmem:[%s299 + $0x174] sm:$0xff]
        %v399 = vld [vmem:[%s299 + $0x17c] sm:$0xff]
        %v400 = vld [vmem:[%s299 + $0x184] sm:$0xf]
        %v401 = vld [vmem:[%s299 + $0x188] sm:$0xff]
        %v402 = vld [vmem:[%s299 + $0x190] sm:$0xff]
        %v403 = vld [vmem:[%s299 + $0x198] sm:$0xff]
        %v404 = vld [vmem:[%s299 + $0x1a0] sm:$0xf]
        %v405 = vld [vmem:[%s299 + $0x1a4] sm:$0xff]
        %v406 = vld [vmem:[%s299 + $0x1ac] sm:$0xff]
        %v407 = vld [vmem:[%s299 + $0x1b4] sm:$0xff]
        %v408 = vld [vmem:[%s299 + $0x1bc] sm:$0xf]
        %v409 = vld [vmem:[#allocation5] sm:$0xf]
        %v410 = vld [vmem:[#allocation5 + $0x4] sm:$0xf]
        %v411 = vld [vmem:[#allocation5 + $0x8] sm:$0xf]
        %v412 = vld [vmem:[#allocation5 + $0xc] sm:$0xf]
        %v413 = vld [vmem:[#allocation5 + $0x10] sm:$0xf]
        %v414 = vld [vmem:[#allocation5 + $0x14] sm:$0xf]
        %v415 = vld [vmem:[#allocation5 + $0x18] sm:$0xf]
        %v416 = vld [vmem:[#allocation5 + $0x1c] sm:$0xf]
        %v417 = vld [vmem:[#allocation5 + $0x20] sm:$0xf]
        %v418 = vld [vmem:[#allocation5 + $0x24] sm:$0xf]
        %v419 = vld [vmem:[#allocation5 + $0x28] sm:$0xf]
        %v420 = vld [vmem:[#allocation5 + $0x2c] sm:$0xf]
        %v421 = vld [vmem:[#allocation5 + $0x30] sm:$0xf]
        %v422 = vld [vmem:[#allocation5 + $0x34] sm:$0xf]
        %v423 = vld [vmem:[#allocation5 + $0x38] sm:$0xf]
        %v424 = vld [vmem:[#allocation5 + $0x3c] sm:$0xf]
        %v425 = vld [vmem:[#allocation5 + $0x40] sm:$0xf]
        %v426 = vld [vmem:[#allocation5 + $0x44] sm:$0xf]
        %v427 = vld [vmem:[#allocation5 + $0x48] sm:$0xf]
        %v428 = vld [vmem:[#allocation5 + $0x4c] sm:$0xf]
        %v429 = vld [vmem:[#allocation5 + $0x50] sm:$0xf]
        %v430 = vld [vmem:[#allocation5 + $0x54] sm:$0xf]
        %v431 = vld [vmem:[#allocation5 + $0x58] sm:$0xf]
        %v432 = vld [vmem:[#allocation5 + $0x5c] sm:$0xf]
        %v433 = vld [vmem:[#allocation5 + $0x60] sm:$0xf]
        %v434 = vld [vmem:[#allocation5 + $0x64] sm:$0xf]
        %v435 = vld [vmem:[#allocation5 + $0x68] sm:$0xf]
        %v436 = vld [vmem:[#allocation5 + $0x6c] sm:$0xf]
        %v437 = vld [vmem:[#allocation5 + $0x70] sm:$0xf]
        %v438 = vld [vmem:[#allocation5 + $0x74] sm:$0xf]
        %v439 = vld [vmem:[#allocation5 + $0x78] sm:$0xf]
        %v440 = vld [vmem:[#allocation5 + $0x7c] sm:$0xf]
        %v441 = vld [vmem:[#allocation5 + $0x80] sm:$0xf]
        %v442 = vld [vmem:[#allocation5 + $0x84] sm:$0xf]
        %v443 = vld [vmem:[#allocation5 + $0x88] sm:$0xf]
        %v444 = vld [vmem:[#allocation5 + $0x8c] sm:$0xf]
        %v445 = vld [vmem:[#allocation5 + $0x90] sm:$0xf]
        %v446 = vld [vmem:[#allocation5 + $0x94] sm:$0xf]
        %v447 = vld [vmem:[#allocation5 + $0x98] sm:$0xf]
        %v448 = vld [vmem:[#allocation5 + $0x9c] sm:$0xf]
        %v449 = vld [vmem:[#allocation5 + $0xa0] sm:$0xf]
        %v450 = vld [vmem:[#allocation5 + $0xa4] sm:$0xf]
        %v451 = vld [vmem:[#allocation5 + $0xa8] sm:$0xf]
        %v452 = vld [vmem:[#allocation5 + $0xac] sm:$0xf]
        %v453 = vld [vmem:[#allocation5 + $0xb0] sm:$0xf]
        %v454 = vld [vmem:[#allocation5 + $0xb4] sm:$0xf]
        %v455 = vld [vmem:[#allocation5 + $0xb8] sm:$0xf]
        %v456 = vld [vmem:[#allocation5 + $0xbc] sm:$0xf]
        %v457 = vld [vmem:[#allocation5 + $0xc0] sm:$0xf]
        %v458 = vld [vmem:[#allocation5 + $0xc4] sm:$0xf]
        %v459 = vld [vmem:[#allocation5 + $0xc8] sm:$0xf]
        %v460 = vld [vmem:[#allocation5 + $0xcc] sm:$0xf]
        %v461 = vld [vmem:[#allocation5 + $0xd0] sm:$0xf]
        %v462 = vld [vmem:[#allocation5 + $0xd4] sm:$0xf]
        %v463 = vld [vmem:[#allocation5 + $0xd8] sm:$0xf]
        %v464 = vld [vmem:[#allocation5 + $0xdc] sm:$0xf]
        %v465 = vld [vmem:[#allocation5 + $0xe0] sm:$0xf]
        %v466 = vld [vmem:[#allocation5 + $0xe4] sm:$0xf]
        %v467 = vld [vmem:[#allocation5 + $0xe8] sm:$0xf]
        %v468 = vld [vmem:[#allocation5 + $0xec] sm:$0xf]
        %v469 = vld [vmem:[#allocation5 + $0xf0] sm:$0xf]
        %v470 = vld [vmem:[#allocation5 + $0xf4] sm:$0xf]
        %v471 = vld [vmem:[#allocation5 + $0xf8] sm:$0xf]
        %v472 = vld [vmem:[#allocation5 + $0xfc] sm:$0xf]
        %v473 = vld [vmem:[#allocation5 + $0x100] sm:$0xf]
        %v474 = vld [vmem:[#allocation5 + $0x104] sm:$0xf]
        %v475 = vld [vmem:[#allocation5 + $0x108] sm:$0xf]
        %v476 = vld [vmem:[#allocation5 + $0x10c] sm:$0xf]
        %v477 = vld [vmem:[#allocation5 + $0x110] sm:$0xf]
        %v478 = vld [vmem:[#allocation5 + $0x114] sm:$0xf]
        %v479 = vld [vmem:[#allocation5 + $0x118] sm:$0xf]
        %v480 = vld [vmem:[#allocation5 + $0x11c] sm:$0xf]
        %v481 = vld [vmem:[#allocation5 + $0x120] sm:$0xf]
        %v482 = vld [vmem:[#allocation5 + $0x124] sm:$0xf]
        %v483 = vld [vmem:[#allocation5 + $0x128] sm:$0xf]
        %v484 = vld [vmem:[#allocation5 + $0x12c] sm:$0xf]
        %v485 = vld [vmem:[#allocation5 + $0x130] sm:$0xf]
        %v486 = vld [vmem:[#allocation5 + $0x134] sm:$0xf]
        %v487 = vld [vmem:[#allocation5 + $0x138] sm:$0xf]
        %v488 = vld [vmem:[#allocation5 + $0x13c] sm:$0xf]
        %v489 = vld [vmem:[#allocation5 + $0x140] sm:$0xf]
        %v490 = vld [vmem:[#allocation5 + $0x144] sm:$0xf]
        %v491 = vld [vmem:[#allocation5 + $0x148] sm:$0xf]
        %v492 = vld [vmem:[#allocation5 + $0x14c] sm:$0xf]
        %v493 = vld [vmem:[#allocation5 + $0x150] sm:$0xf]
        %v494 = vld [vmem:[#allocation5 + $0x154] sm:$0xf]
        %v495 = vld [vmem:[#allocation5 + $0x158] sm:$0xf]
        %v496 = vld [vmem:[#allocation5 + $0x15c] sm:$0xf]
        %v497 = vld [vmem:[#allocation5 + $0x160] sm:$0xf]
        %v498 = vld [vmem:[#allocation5 + $0x164] sm:$0xf]
        %v499 = vld [vmem:[#allocation5 + $0x168] sm:$0xf]
        %v500 = vld [vmem:[#allocation5 + $0x16c] sm:$0xf]
        %v501 = vld [vmem:[#allocation5 + $0x170] sm:$0xf]
        %v502 = vld [vmem:[#allocation5 + $0x174] sm:$0xf]
        %v503 = vld [vmem:[#allocation5 + $0x178] sm:$0xf]
        %v504 = vld [vmem:[#allocation5 + $0x17c] sm:$0xf]
        %v505 = vld [vmem:[#allocation5 + $0x180] sm:$0xf]
        %v506 = vld [vmem:[#allocation5 + $0x184] sm:$0xf]
        %v507 = vld [vmem:[#allocation5 + $0x188] sm:$0xf]
        %v508 = vld [vmem:[#allocation5 + $0x18c] sm:$0xf]
        %v509 = vld [vmem:[#allocation5 + $0x190] sm:$0xf]
        %v510 = vld [vmem:[#allocation5 + $0x194] sm:$0xf]
        %v511 = vld [vmem:[#allocation5 + $0x198] sm:$0xf]
        %v512 = vld [vmem:[#allocation5 + $0x19c] sm:$0xf]
        %v513 = vld [vmem:[#allocation5 + $0x1a0] sm:$0xf]
        %v514 = vld [vmem:[#allocation5 + $0x1a4] sm:$0xf]
        %v515 = vld [vmem:[#allocation5 + $0x1a8] sm:$0xf]
        %v516 = vld [vmem:[#allocation5 + $0x1ac] sm:$0xf]
        %v517 = vld [vmem:[#allocation5 + $0x1b0] sm:$0xf]
        %v518 = vld [vmem:[#allocation5 + $0x1b4] sm:$0xf]
        %v519 = vld [vmem:[#allocation5 + $0x1b8] sm:$0xf]
        %v520 = vld [vmem:[#allocation5 + $0x1bc] sm:$0xf]
        %v521 = vld [vmem:[%s2] sm:$0x1]
        %v523 = vlaneseq
        %v524 = vshrl.u32 %v523, 7
        %v525 = vsub.s32 0, %v524
        %v526 = vrot.slane %v521, %v525
        %v592 = vunpack.c.l.b16 %v345
        %v593 = vunpack.c.h.b16 %v345
        %v594 = vunpack.c.l.b16 %v346
        %v595 = vunpack.c.h.b16 %v346
        %v596 = vunpack.c.l.b16 %v347
        %v597 = vunpack.c.h.b16 %v347
        %v598 = vunpack.c.l.b16 %v348
        %v599 = vunpack.c.l.b16 %v349
        %v600 = vunpack.c.h.b16 %v349
        %v601 = vunpack.c.l.b16 %v350
        %v602 = vunpack.c.h.b16 %v350
        %v603 = vunpack.c.l.b16 %v351
        %v604 = vunpack.c.h.b16 %v351
        %v605 = vunpack.c.l.b16 %v352
        %v606 = vunpack.c.l.b16 %v353
        %v607 = vunpack.c.h.b16 %v353
        %v608 = vunpack.c.l.b16 %v354
        %v609 = vunpack.c.h.b16 %v354
        %v610 = vunpack.c.l.b16 %v355
        %v611 = vunpack.c.h.b16 %v355
        %v612 = vunpack.c.l.b16 %v356
        %v613 = vunpack.c.l.b16 %v357
        %v614 = vunpack.c.h.b16 %v357
        %v615 = vunpack.c.l.b16 %v358
        %v616 = vunpack.c.h.b16 %v358
        %v617 = vunpack.c.l.b16 %v359
        %v618 = vunpack.c.h.b16 %v359
        %v619 = vunpack.c.l.b16 %v360
        %v620 = vunpack.c.l.b16 %v361
        %v621 = vunpack.c.h.b16 %v361
        %v622 = vunpack.c.l.b16 %v362
        %v623 = vunpack.c.h.b16 %v362
        %v624 = vunpack.c.l.b16 %v363
        %v625 = vunpack.c.h.b16 %v363
        %v626 = vunpack.c.l.b16 %v364
        %v627 = vunpack.c.l.b16 %v365
        %v628 = vunpack.c.h.b16 %v365
        %v629 = vunpack.c.l.b16 %v366
        %v630 = vunpack.c.h.b16 %v366
        %v631 = vunpack.c.l.b16 %v367
        %v632 = vunpack.c.h.b16 %v367
        %v633 = vunpack.c.l.b16 %v368
        %v634 = vunpack.c.l.b16 %v369
        %v635 = vunpack.c.h.b16 %v369
        %v636 = vunpack.c.l.b16 %v370
        %v637 = vunpack.c.h.b16 %v370
        %v638 = vunpack.c.l.b16 %v371
        %v639 = vunpack.c.h.b16 %v371
        %v640 = vunpack.c.l.b16 %v372
        %v641 = vunpack.c.l.b16 %v373
        %v642 = vunpack.c.h.b16 %v373
        %v643 = vunpack.c.l.b16 %v374
        %v644 = vunpack.c.h.b16 %v374
        %v645 = vunpack.c.l.b16 %v375
        %v646 = vunpack.c.h.b16 %v375
        %v647 = vunpack.c.l.b16 %v376
        %v648 = vunpack.c.l.b16 %v377
        %v649 = vunpack.c.h.b16 %v377
        %v650 = vunpack.c.l.b16 %v378
        %v651 = vunpack.c.h.b16 %v378
        %v652 = vunpack.c.l.b16 %v379
        %v653 = vunpack.c.h.b16 %v379
        %v654 = vunpack.c.l.b16 %v380
        %v655 = vunpack.c.l.b16 %v381
        %v656 = vunpack.c.h.b16 %v381
        %v657 = vunpack.c.l.b16 %v382
        %v658 = vunpack.c.h.b16 %v382
        %v659 = vunpack.c.l.b16 %v383
        %v660 = vunpack.c.h.b16 %v383
        %v661 = vunpack.c.l.b16 %v384
        %v662 = vunpack.c.l.b16 %v385
        %v663 = vunpack.c.h.b16 %v385
        %v664 = vunpack.c.l.b16 %v386
        %v665 = vunpack.c.h.b16 %v386
        %v666 = vunpack.c.l.b16 %v387
        %v667 = vunpack.c.h.b16 %v387
        %v668 = vunpack.c.l.b16 %v388
        %v669 = vunpack.c.l.b16 %v389
        %v670 = vunpack.c.h.b16 %v389
        %v671 = vunpack.c.l.b16 %v390
        %v672 = vunpack.c.h.b16 %v390
        %v673 = vunpack.c.l.b16 %v391
        %v674 = vunpack.c.h.b16 %v391
        %v675 = vunpack.c.l.b16 %v392
        %v676 = vunpack.c.l.b16 %v393
        %v677 = vunpack.c.h.b16 %v393
        %v678 = vunpack.c.l.b16 %v394
        %v679 = vunpack.c.h.b16 %v394
        %v680 = vunpack.c.l.b16 %v395
        %v681 = vunpack.c.h.b16 %v395
        %v682 = vunpack.c.l.b16 %v396
        %v683 = vunpack.c.l.b16 %v397
        %v684 = vunpack.c.h.b16 %v397
        %v685 = vunpack.c.l.b16 %v398
        %v686 = vunpack.c.h.b16 %v398
        %v687 = vunpack.c.l.b16 %v399
        %v688 = vunpack.c.h.b16 %v399
        %v689 = vunpack.c.l.b16 %v400
        %v690 = vunpack.c.l.b16 %v401
        %v691 = vunpack.c.h.b16 %v401
        %v692 = vunpack.c.l.b16 %v402
        %v693 = vunpack.c.h.b16 %v402
        %v694 = vunpack.c.l.b16 %v403
        %v695 = vunpack.c.h.b16 %v403
        %v696 = vunpack.c.l.b16 %v404
        %v697 = vunpack.c.l.b16 %v405
        %v698 = vunpack.c.h.b16 %v405
        %v699 = vunpack.c.l.b16 %v406
        %v700 = vunpack.c.h.b16 %v406
        %v701 = vunpack.c.l.b16 %v407
        %v702 = vunpack.c.h.b16 %v407
        %v703 = vunpack.c.l.b16 %v408
        %v704 = vpack.c.b16 %v599, %v592
        %v705 = vpack.c.b16 %v600, %v593
        %v706 = vpack.c.b16 %v601, %v594
        %v707 = vpack.c.b16 %v602, %v595
        %v708 = vpack.c.b16 %v603, %v596
        %v709 = vpack.c.b16 %v604, %v597
        %v710 = vpack.c.b16 %v605, %v598
        %v711 = vpack.c.b16 %v613, %v606
        %v712 = vpack.c.b16 %v614, %v607
        %v713 = vpack.c.b16 %v615, %v608
        %v714 = vpack.c.b16 %v616, %v609
        %v715 = vpack.c.b16 %v617, %v610
        %v716 = vpack.c.b16 %v618, %v611
        %v717 = vpack.c.b16 %v619, %v612
        %v718 = vpack.c.b16 %v627, %v620
        %v719 = vpack.c.b16 %v628, %v621
        %v720 = vpack.c.b16 %v629, %v622
        %v721 = vpack.c.b16 %v630, %v623
        %v722 = vpack.c.b16 %v631, %v624
        %v723 = vpack.c.b16 %v632, %v625
        %v724 = vpack.c.b16 %v633, %v626
        %v725 = vpack.c.b16 %v641, %v634
        %v726 = vpack.c.b16 %v642, %v635
        %v727 = vpack.c.b16 %v643, %v636
        %v728 = vpack.c.b16 %v644, %v637
        %v729 = vpack.c.b16 %v645, %v638
        %v730 = vpack.c.b16 %v646, %v639
        %v731 = vpack.c.b16 %v647, %v640
        %v732 = vpack.c.b16 %v655, %v648
        %v733 = vpack.c.b16 %v656, %v649
        %v734 = vpack.c.b16 %v657, %v650
        %v735 = vpack.c.b16 %v658, %v651
        %v736 = vpack.c.b16 %v659, %v652
        %v737 = vpack.c.b16 %v660, %v653
        %v738 = vpack.c.b16 %v661, %v654
        %v739 = vpack.c.b16 %v669, %v662
        %v740 = vpack.c.b16 %v670, %v663
        %v741 = vpack.c.b16 %v671, %v664
        %v742 = vpack.c.b16 %v672, %v665
        %v743 = vpack.c.b16 %v673, %v666
        %v744 = vpack.c.b16 %v674, %v667
        %v745 = vpack.c.b16 %v675, %v668
        %v746 = vpack.c.b16 %v683, %v676
        %v747 = vpack.c.b16 %v684, %v677
        %v748 = vpack.c.b16 %v685, %v678
        %v749 = vpack.c.b16 %v686, %v679
        %v750 = vpack.c.b16 %v687, %v680
        %v751 = vpack.c.b16 %v688, %v681
        %v752 = vpack.c.b16 %v689, %v682
        %v753 = vpack.c.b16 %v697, %v690
        %v754 = vpack.c.b16 %v698, %v691
        %v755 = vpack.c.b16 %v699, %v692
        %v756 = vpack.c.b16 %v700, %v693
        %v757 = vpack.c.b16 %v701, %v694
        %v758 = vpack.c.b16 %v702, %v695
        %v759 = vpack.c.b16 %v703, %v696
        %v928 = vunpack.c.l.b16 %v409
        %v929 = vunpack.c.l.b16 %v410
        %v930 = vunpack.c.l.b16 %v411
        %v931 = vunpack.c.l.b16 %v412
        %v932 = vunpack.c.l.b16 %v413
        %v933 = vunpack.c.l.b16 %v414
        %v934 = vunpack.c.l.b16 %v415
        %v935 = vunpack.c.l.b16 %v416
        %v936 = vunpack.c.l.b16 %v417
        %v937 = vunpack.c.l.b16 %v418
        %v938 = vunpack.c.l.b16 %v419
        %v939 = vunpack.c.l.b16 %v420
        %v940 = vunpack.c.l.b16 %v421
        %v941 = vunpack.c.l.b16 %v422
        %v942 = vunpack.c.l.b16 %v423
        %v943 = vunpack.c.l.b16 %v424
        %v944 = vunpack.c.l.b16 %v425
        %v945 = vunpack.c.l.b16 %v426
        %v946 = vunpack.c.l.b16 %v427
        %v947 = vunpack.c.l.b16 %v428
        %v948 = vunpack.c.l.b16 %v429
        %v949 = vunpack.c.l.b16 %v430
        %v950 = vunpack.c.l.b16 %v431
        %v951 = vunpack.c.l.b16 %v432
        %v952 = vunpack.c.l.b16 %v433
        %v953 = vunpack.c.l.b16 %v434
        %v954 = vunpack.c.l.b16 %v435
        %v955 = vunpack.c.l.b16 %v436
        %v956 = vunpack.c.l.b16 %v437
        %v957 = vunpack.c.l.b16 %v438
        %v958 = vunpack.c.l.b16 %v439
        %v959 = vunpack.c.l.b16 %v440
        %v960 = vunpack.c.l.b16 %v441
        %v961 = vunpack.c.l.b16 %v442
        %v962 = vunpack.c.l.b16 %v443
        %v963 = vunpack.c.l.b16 %v444
        %v964 = vunpack.c.l.b16 %v445
        %v965 = vunpack.c.l.b16 %v446
        %v966 = vunpack.c.l.b16 %v447
        %v967 = vunpack.c.l.b16 %v448
        %v968 = vunpack.c.l.b16 %v449
        %v969 = vunpack.c.l.b16 %v450
        %v970 = vunpack.c.l.b16 %v451
        %v971 = vunpack.c.l.b16 %v452
        %v972 = vunpack.c.l.b16 %v453
        %v973 = vunpack.c.l.b16 %v454
        %v974 = vunpack.c.l.b16 %v455
        %v975 = vunpack.c.l.b16 %v456
        %v976 = vunpack.c.l.b16 %v457
        %v977 = vunpack.c.l.b16 %v458
        %v978 = vunpack.c.l.b16 %v459
        %v979 = vunpack.c.l.b16 %v460
        %v980 = vunpack.c.l.b16 %v461
        %v981 = vunpack.c.l.b16 %v462
        %v982 = vunpack.c.l.b16 %v463
        %v983 = vunpack.c.l.b16 %v464
        %v984 = vunpack.c.l.b16 %v465
        %v985 = vunpack.c.l.b16 %v466
        %v986 = vunpack.c.l.b16 %v467
        %v987 = vunpack.c.l.b16 %v468
        %v988 = vunpack.c.l.b16 %v469
        %v989 = vunpack.c.l.b16 %v470
        %v990 = vunpack.c.l.b16 %v471
        %v991 = vunpack.c.l.b16 %v472
        %v992 = vunpack.c.l.b16 %v473
        %v993 = vunpack.c.l.b16 %v474
        %v994 = vunpack.c.l.b16 %v475
        %v995 = vunpack.c.l.b16 %v476
        %v996 = vunpack.c.l.b16 %v477
        %v997 = vunpack.c.l.b16 %v478
        %v998 = vunpack.c.l.b16 %v479
        %v999 = vunpack.c.l.b16 %v480
        %v1000 = vunpack.c.l.b16 %v481
        %v1001 = vunpack.c.l.b16 %v482
        %v1002 = vunpack.c.l.b16 %v483
        %v1003 = vunpack.c.l.b16 %v484
        %v1004 = vunpack.c.l.b16 %v485
        %v1005 = vunpack.c.l.b16 %v486
        %v1006 = vunpack.c.l.b16 %v487
        %v1007 = vunpack.c.l.b16 %v488
        %v1008 = vunpack.c.l.b16 %v489
        %v1009 = vunpack.c.l.b16 %v490
        %v1010 = vunpack.c.l.b16 %v491
        %v1011 = vunpack.c.l.b16 %v492
        %v1012 = vunpack.c.l.b16 %v493
        %v1013 = vunpack.c.l.b16 %v494
        %v1014 = vunpack.c.l.b16 %v495
        %v1015 = vunpack.c.l.b16 %v496
        %v1016 = vunpack.c.l.b16 %v497
        %v1017 = vunpack.c.l.b16 %v498
        %v1018 = vunpack.c.l.b16 %v499
        %v1019 = vunpack.c.l.b16 %v500
        %v1020 = vunpack.c.l.b16 %v501
        %v1021 = vunpack.c.l.b16 %v502
        %v1022 = vunpack.c.l.b16 %v503
        %v1023 = vunpack.c.l.b16 %v504
        %v1024 = vunpack.c.l.b16 %v505
        %v1025 = vunpack.c.l.b16 %v506
        %v1026 = vunpack.c.l.b16 %v507
        %v1027 = vunpack.c.l.b16 %v508
        %v1028 = vunpack.c.l.b16 %v509
        %v1029 = vunpack.c.l.b16 %v510
        %v1030 = vunpack.c.l.b16 %v511
        %v1031 = vunpack.c.l.b16 %v512
        %v1032 = vunpack.c.l.b16 %v513
        %v1033 = vunpack.c.l.b16 %v514
        %v1034 = vunpack.c.l.b16 %v515
        %v1035 = vunpack.c.l.b16 %v516
        %v1036 = vunpack.c.l.b16 %v517
        %v1037 = vunpack.c.l.b16 %v518
        %v1038 = vunpack.c.l.b16 %v519
        %v1039 = vunpack.c.l.b16 %v520
        %v1040 = vpack.c.b16 %v929, %v928
        %v1041 = vpack.c.b16 %v931, %v930
        %v1042 = vpack.c.b16 %v933, %v932
        %v1043 = vpack.c.b16 %v935, %v934
        %v1044 = vpack.c.b16 %v937, %v936
        %v1045 = vpack.c.b16 %v939, %v938
        %v1046 = vpack.c.b16 %v941, %v940
        %v1047 = vpack.c.b16 %v943, %v942
        %v1048 = vpack.c.b16 %v945, %v944
        %v1049 = vpack.c.b16 %v947, %v946
        %v1050 = vpack.c.b16 %v949, %v948
        %v1051 = vpack.c.b16 %v951, %v950
        %v1052 = vpack.c.b16 %v953, %v952
        %v1053 = vpack.c.b16 %v955, %v954
        %v1054 = vpack.c.b16 %v957, %v956
        %v1055 = vpack.c.b16 %v959, %v958
        %v1056 = vpack.c.b16 %v961, %v960
        %v1057 = vpack.c.b16 %v963, %v962
        %v1058 = vpack.c.b16 %v965, %v964
        %v1059 = vpack.c.b16 %v967, %v966
        %v1060 = vpack.c.b16 %v969, %v968
        %v1061 = vpack.c.b16 %v971, %v970
        %v1062 = vpack.c.b16 %v973, %v972
        %v1063 = vpack.c.b16 %v975, %v974
        %v1064 = vpack.c.b16 %v977, %v976
        %v1065 = vpack.c.b16 %v979, %v978
        %v1066 = vpack.c.b16 %v981, %v980
        %v1067 = vpack.c.b16 %v983, %v982
        %v1068 = vpack.c.b16 %v985, %v984
        %v1069 = vpack.c.b16 %v987, %v986
        %v1070 = vpack.c.b16 %v989, %v988
        %v1071 = vpack.c.b16 %v991, %v990
        %v1072 = vpack.c.b16 %v993, %v992
        %v1073 = vpack.c.b16 %v995, %v994
        %v1074 = vpack.c.b16 %v997, %v996
        %v1075 = vpack.c.b16 %v999, %v998
        %v1076 = vpack.c.b16 %v1001, %v1000
        %v1077 = vpack.c.b16 %v1003, %v1002
        %v1078 = vpack.c.b16 %v1005, %v1004
        %v1079 = vpack.c.b16 %v1007, %v1006
        %v1080 = vpack.c.b16 %v1009, %v1008
        %v1081 = vpack.c.b16 %v1011, %v1010
        %v1082 = vpack.c.b16 %v1013, %v1012
        %v1083 = vpack.c.b16 %v1015, %v1014
        %v1084 = vpack.c.b16 %v1017, %v1016
        %v1085 = vpack.c.b16 %v1019, %v1018
        %v1086 = vpack.c.b16 %v1021, %v1020
        %v1087 = vpack.c.b16 %v1023, %v1022
        %v1088 = vpack.c.b16 %v1025, %v1024
        %v1089 = vpack.c.b16 %v1027, %v1026
        %v1090 = vpack.c.b16 %v1029, %v1028
        %v1091 = vpack.c.b16 %v1031, %v1030
        %v1092 = vpack.c.b16 %v1033, %v1032
        %v1093 = vpack.c.b16 %v1035, %v1034
        %v1094 = vpack.c.b16 %v1037, %v1036
        %v1095 = vpack.c.b16 %v1039, %v1038
        %1152 = vmatprep.subr.bf16.mxu0 0
        %1153 = vmatpush1.bf16.msra.mxu0 %v1040
        %1154 = vmatprep.subr.bf16.mxu0 0
        %1155 = vmatpush1.bf16.msra.mxu0 %v1041
        %1156 = vmatprep.subr.bf16.mxu0 0
        %1157 = vmatpush1.bf16.msra.mxu0 %v1042
        %1158 = vmatprep.subr.bf16.mxu0 0
        %1159 = vmatpush1.bf16.msra.mxu0 %v1043
        %1160 = vmatprep.subr.bf16.mxu0 0
        %1161 = vmatpush1.bf16.msra.mxu0 %v1044
        %1162 = vmatprep.subr.bf16.mxu0 0
        %1163 = vmatpush1.bf16.msra.mxu0 %v1045
        %1164 = vmatprep.subr.bf16.mxu0 0
        %1165 = vmatpush1.bf16.msra.mxu0 %v1046
        %1166 = vmatprep.subr.bf16.mxu0 0
        %1167 = vmatpush1.bf16.msra.mxu0 %v1047
        %1168 = vmatprep.subr.bf16.mxu0 0
        %1169 = vmatpush1.bf16.msra.mxu0 %v1048
        %1170 = vmatprep.subr.bf16.mxu0 0
        %1171 = vmatpush1.bf16.msra.mxu0 %v1049
        %1172 = vmatprep.subr.bf16.mxu0 0
        %1173 = vmatpush1.bf16.msra.mxu0 %v1050
        %1174 = vmatprep.subr.bf16.mxu0 0
        %1175 = vmatpush1.bf16.msra.mxu0 %v1051
        %1176 = vmatprep.subr.bf16.mxu0 0
        %1177 = vmatpush1.bf16.msra.mxu0 %v1052
        %1178 = vmatprep.subr.bf16.mxu0 0
        %1179 = vmatpush1.bf16.msra.mxu0 %v1053
        %1180 = vmatprep.subr.bf16.mxu0 0
        %1181 = vmatpush1.bf16.msra.mxu0 %v1054
        %1182 = vmatprep.subr.bf16.mxu0 0
        %1183 = vmatpush1.bf16.msra.mxu0 %v1055
        %1184 = vmatprep.mubr.bf16.mxu0 %v705
        %1185 = vmatmul.mubr.bf16.gmra.mrb[0].mxu0 %v704
        %v1186 = vpop.f32.mrb[0].mxu0
        %v1187 = vadd.f32 %v526, %v1186
        %v1188 = vpop.f32.mrb[0].mxu0
        %v1189 = vpop.f32.mrb[0].mxu0
        %v1190 = vadd.f32 %v526, %v1189
        %v1191 = vpop.f32.mrb[0].mxu0
        %1192 = vmatprep.mubr.bf16.mxu0 %v712
        %1193 = vmatmul.mubr.bf16.gmra.mrb[0].mxu0 %v711
        %v1194 = vpop.f32.mrb[0].mxu0
        %v1195 = vadd.f32 %v526, %v1194
        %v1196 = vpop.f32.mrb[0].mxu0
        %v1197 = vpop.f32.mrb[0].mxu0
        %v1198 = vadd.f32 %v526, %v1197
        %v1199 = vpop.f32.mrb[0].mxu0
        %1200 = vmatprep.mubr.bf16.mxu0 %v719
        %1201 = vmatmul.mubr.bf16.gmra.mrb[0].mxu0 %v718
        %v1202 = vpop.f32.mrb[0].mxu0
        %v1203 = vadd.f32 %v526, %v1202
        %v1204 = vpop.f32.mrb[0].mxu0
        %v1205 = vpop.f32.mrb[0].mxu0
        %v1206 = vadd.f32 %v526, %v1205
        %v1207 = vpop.f32.mrb[0].mxu0
        %1208 = vmatprep.mubr.bf16.mxu0 %v726
        %1209 = vmatmul.mubr.bf16.gmra.mrb[0].mxu0 %v725
        %v1210 = vpop.f32.mrb[0].mxu0
        %v1211 = vadd.f32 %v526, %v1210
        %v1212 = vpop.f32.mrb[0].mxu0
        %v1213 = vpop.f32.mrb[0].mxu0
        %v1214 = vadd.f32 %v526, %v1213
        %v1215 = vpop.f32.mrb[0].mxu0
        %1216 = vmatprep.mubr.bf16.mxu0 %v733
        %1217 = vmatmul.mubr.bf16.gmra.mrb[0].mxu0 %v732
        %v1218 = vpop.f32.mrb[0].mxu0
        %v1219 = vadd.f32 %v526, %v1218
        %v1220 = vpop.f32.mrb[0].mxu0
        %v1221 = vpop.f32.mrb[0].mxu0
        %v1222 = vadd.f32 %v526, %v1221
        %v1223 = vpop.f32.mrb[0].mxu0
        %1224 = vmatprep.mubr.bf16.mxu0 %v740
        %1225 = vmatmul.mubr.bf16.gmra.mrb[0].mxu0 %v739
        %v1226 = vpop.f32.mrb[0].mxu0
        %v1227 = vadd.f32 %v526, %v1226
        %v1228 = vpop.f32.mrb[0].mxu0
        %v1229 = vpop.f32.mrb[0].mxu0
        %v1230 = vadd.f32 %v526, %v1229
        %v1231 = vpop.f32.mrb[0].mxu0
        %1232 = vmatprep.mubr.bf16.mxu0 %v747
        %1233 = vmatmul.mubr.bf16.gmra.mrb[0].mxu0 %v746
        %v1234 = vpop.f32.mrb[0].mxu0
        %v1235 = vadd.f32 %v526, %v1234
        %v1236 = vpop.f32.mrb[0].mxu0
        %v1237 = vpop.f32.mrb[0].mxu0
        %v1238 = vadd.f32 %v526, %v1237
        %v1239 = vpop.f32.mrb[0].mxu0
        %1240 = vmatprep.mubr.bf16.mxu0 %v754
        %1241 = vmatmul.mubr.bf16.gmra.mrb[0].mxu0 %v753
        %v1242 = vpop.f32.mrb[0].mxu0
        %v1243 = vadd.f32 %v526, %v1242
        %v1244 = vpop.f32.mrb[0].mxu0
        %v1245 = vpop.f32.mrb[0].mxu0
        %v1246 = vadd.f32 %v526, %v1245
        %v1247 = vpop.f32.mrb[0].mxu0
        %1248 = vdwg.mxu0
        %1249 = vmatprep.subr.bf16.mxu0 0
        %1250 = vmatpush1.bf16.msra.mxu0 %v1056
        %1251 = vmatprep.subr.bf16.mxu0 0
        %1252 = vmatpush1.bf16.msra.mxu0 %v1057
        %1253 = vmatprep.subr.bf16.mxu0 0
        %1254 = vmatpush1.bf16.msra.mxu0 %v1058
        %1255 = vmatprep.subr.bf16.mxu0 0
        %1256 = vmatpush1.bf16.msra.mxu0 %v1059
        %1257 = vmatprep.subr.bf16.mxu0 0
        %1258 = vmatpush1.bf16.msra.mxu0 %v1060
        %1259 = vmatprep.subr.bf16.mxu0 0
        %1260 = vmatpush1.bf16.msra.mxu0 %v1061
        %1261 = vmatprep.subr.bf16.mxu0 0
        %1262 = vmatpush1.bf16.msra.mxu0 %v1062
        %1263 = vmatprep.subr.bf16.mxu0 0
        %1264 = vmatpush1.bf16.msra.mxu0 %v1063
        %1265 = vmatprep.subr.bf16.mxu0 0
        %1266 = vmatpush1.bf16.msra.mxu0 %v1064
        %1267 = vmatprep.subr.bf16.mxu0 0
        %1268 = vmatpush1.bf16.msra.mxu0 %v1065
        %1269 = vmatprep.subr.bf16.mxu0 0
        %1270 = vmatpush1.bf16.msra.mxu0 %v1066
        %1271 = vmatprep.subr.bf16.mxu0 0
        %1272 = vmatpush1.bf16.msra.mxu0 %v1067
        %1273 = vmatprep.subr.bf16.mxu0 0
        %1274 = vmatpush1.bf16.msra.mxu0 %v1068
        %1275 = vmatprep.subr.bf16.mxu0 0
        %1276 = vmatpush1.bf16.msra.mxu0 %v1069
        %1277 = vmatprep.subr.bf16.mxu0 0
        %1278 = vmatpush1.bf16.msra.mxu0 %v1070
        %1279 = vmatprep.subr.bf16.mxu0 0
        %1280 = vmatpush1.bf16.msra.mxu0 %v1071
        %1281 = vmatprep.mubr.bf16.mxu0 %v707
        %1282 = vmatmul.mubr.bf16.gmra.mrb[0].mxu0 %v706
        %v1283 = vpop.f32.mrb[0].mxu0
        %v1284 = vadd.f32 %v1187, %v1283
        %v1285 = vpop.f32.mrb[0].mxu0
        %v1286 = vpop.f32.mrb[0].mxu0
        %v1287 = vadd.f32 %v1190, %v1286
        %v1288 = vpop.f32.mrb[0].mxu0
        %1289 = vmatprep.mubr.bf16.mxu0 %v714
        %1290 = vmatmul.mubr.bf16.gmra.mrb[0].mxu0 %v713
        %v1291 = vpop.f32.mrb[0].mxu0
        %v1292 = vadd.f32 %v1195, %v1291
        %v1293 = vpop.f32.mrb[0].mxu0
        %v1294 = vpop.f32.mrb[0].mxu0
        %v1295 = vadd.f32 %v1198, %v1294
        %v1296 = vpop.f32.mrb[0].mxu0
        %1297 = vmatprep.mubr.bf16.mxu0 %v721
        %1298 = vmatmul.mubr.bf16.gmra.mrb[0].mxu0 %v720
        %v1299 = vpop.f32.mrb[0].mxu0
        %v1300 = vadd.f32 %v1203, %v1299
        %v1301 = vpop.f32.mrb[0].mxu0
        %v1302 = vpop.f32.mrb[0].mxu0
        %v1303 = vadd.f32 %v1206, %v1302
        %v1304 = vpop.f32.mrb[0].mxu0
        %1305 = vmatprep.mubr.bf16.mxu0 %v728
        %1306 = vmatmul.mubr.bf16.gmra.mrb[0].mxu0 %v727
        %v1307 = vpop.f32.mrb[0].mxu0
        %v1308 = vadd.f32 %v1211, %v1307
        %v1309 = vpop.f32.mrb[0].mxu0
        %v1310 = vpop.f32.mrb[0].mxu0
        %v1311 = vadd.f32 %v1214, %v1310
        %v1312 = vpop.f32.mrb[0].mxu0
        %1313 = vmatprep.mubr.bf16.mxu0 %v735
        %1314 = vmatmul.mubr.bf16.gmra.mrb[0].mxu0 %v734
        %v1315 = vpop.f32.mrb[0].mxu0
        %v1316 = vadd.f32 %v1219, %v1315
        %v1317 = vpop.f32.mrb[0].mxu0
        %v1318 = vpop.f32.mrb[0].mxu0
        %v1319 = vadd.f32 %v1222, %v1318
        %v1320 = vpop.f32.mrb[0].mxu0
        %1321 = vmatprep.mubr.bf16.mxu0 %v742
        %1322 = vmatmul.mubr.bf16.gmra.mrb[0].mxu0 %v741
        %v1323 = vpop.f32.mrb[0].mxu0
        %v1324 = vadd.f32 %v1227, %v1323
        %v1325 = vpop.f32.mrb[0].mxu0
        %v1326 = vpop.f32.mrb[0].mxu0
        %v1327 = vadd.f32 %v1230, %v1326
        %v1328 = vpop.f32.mrb[0].mxu0
        %1329 = vmatprep.mubr.bf16.mxu0 %v749
        %1330 = vmatmul.mubr.bf16.gmra.mrb[0].mxu0 %v748
        %v1331 = vpop.f32.mrb[0].mxu0
        %v1332 = vadd.f32 %v1235, %v1331
        %v1333 = vpop.f32.mrb[0].mxu0
        %v1334 = vpop.f32.mrb[0].mxu0
        %v1335 = vadd.f32 %v1238, %v1334
        %v1336 = vpop.f32.mrb[0].mxu0
        %1337 = vmatprep.mubr.bf16.mxu0 %v756
        %1338 = vmatmul.mubr.bf16.gmra.mrb[0].mxu0 %v755
        %v1339 = vpop.f32.mrb[0].mxu0
        %v1340 = vadd.f32 %v1243, %v1339
        %v1341 = vpop.f32.mrb[0].mxu0
        %v1342 = vpop.f32.mrb[0].mxu0
        %v1343 = vadd.f32 %v1246, %v1342
        %v1344 = vpop.f32.mrb[0].mxu0
        %1345 = vdwg.mxu0
        %1346 = vmatprep.subr.bf16.mxu0 0
        %1347 = vmatpush1.bf16.msra.mxu0 %v1072
        %1348 = vmatprep.subr.bf16.mxu0 0
        %1349 = vmatpush1.bf16.msra.mxu0 %v1073
        %1350 = vmatprep.subr.bf16.mxu0 0
        %1351 = vmatpush1.bf16.msra.mxu0 %v1074
        %1352 = vmatprep.subr.bf16.mxu0 0
        %1353 = vmatpush1.bf16.msra.mxu0 %v1075
        %1354 = vmatprep.subr.bf16.mxu0 0
        %1355 = vmatpush1.bf16.msra.mxu0 %v1076
        %1356 = vmatprep.subr.bf16.mxu0 0
        %1357 = vmatpush1.bf16.msra.mxu0 %v1077
        %1358 = vmatprep.subr.bf16.mxu0 0
        %1359 = vmatpush1.bf16.msra.mxu0 %v1078
        %1360 = vmatprep.subr.bf16.mxu0 0
        %1361 = vmatpush1.bf16.msra.mxu0 %v1079
        %1362 = vmatprep.subr.bf16.mxu0 0
        %1363 = vmatpush1.bf16.msra.mxu0 %v1080
        %1364 = vmatprep.subr.bf16.mxu0 0
        %1365 = vmatpush1.bf16.msra.mxu0 %v1081
        %1366 = vmatprep.subr.bf16.mxu0 0
        %1367 = vmatpush1.bf16.msra.mxu0 %v1082
        %1368 = vmatprep.subr.bf16.mxu0 0
        %1369 = vmatpush1.bf16.msra.mxu0 %v1083
        %1370 = vmatprep.subr.bf16.mxu0 0
        %1371 = vmatpush1.bf16.msra.mxu0 %v1084
        %1372 = vmatprep.subr.bf16.mxu0 0
        %1373 = vmatpush1.bf16.msra.mxu0 %v1085
        %1374 = vmatprep.subr.bf16.mxu0 0
        %1375 = vmatpush1.bf16.msra.mxu0 %v1086
        %1376 = vmatprep.subr.bf16.mxu0 0
        %1377 = vmatpush1.bf16.msra.mxu0 %v1087
        %1378 = vmatprep.mubr.bf16.mxu0 %v709
        %1379 = vmatmul.mubr.bf16.gmra.mrb[0].mxu0 %v708
        %v1380 = vpop.f32.mrb[0].mxu0
        %v1381 = vadd.f32 %v1284, %v1380
        %v1382 = vpop.f32.mrb[0].mxu0
        %v1383 = vpop.f32.mrb[0].mxu0
        %v1384 = vadd.f32 %v1287, %v1383
        %v1385 = vpop.f32.mrb[0].mxu0
        %1386 = vmatprep.mubr.bf16.mxu0 %v716
        %1387 = vmatmul.mubr.bf16.gmra.mrb[0].mxu0 %v715
        %v1388 = vpop.f32.mrb[0].mxu0
        %v1389 = vadd.f32 %v1292, %v1388
        %v1390 = vpop.f32.mrb[0].mxu0
        %v1391 = vpop.f32.mrb[0].mxu0
        %v1392 = vadd.f32 %v1295, %v1391
        %v1393 = vpop.f32.mrb[0].mxu0
        %1394 = vmatprep.mubr.bf16.mxu0 %v723
        %1395 = vmatmul.mubr.bf16.gmra.mrb[0].mxu0 %v722
        %v1396 = vpop.f32.mrb[0].mxu0
        %v1397 = vadd.f32 %v1300, %v1396
        %v1398 = vpop.f32.mrb[0].mxu0
        %v1399 = vpop.f32.mrb[0].mxu0
        %v1400 = vadd.f32 %v1303, %v1399
        %v1401 = vpop.f32.mrb[0].mxu0
        %1402 = vmatprep.mubr.bf16.mxu0 %v730
        %1403 = vmatmul.mubr.bf16.gmra.mrb[0].mxu0 %v729
        %v1404 = vpop.f32.mrb[0].mxu0
        %v1405 = vadd.f32 %v1308, %v1404
        %v1406 = vpop.f32.mrb[0].mxu0
        %v1407 = vpop.f32.mrb[0].mxu0
        %v1408 = vadd.f32 %v1311, %v1407
        %v1409 = vpop.f32.mrb[0].mxu0
        %1410 = vmatprep.mubr.bf16.mxu0 %v737
        %1411 = vmatmul.mubr.bf16.gmra.mrb[0].mxu0 %v736
        %v1412 = vpop.f32.mrb[0].mxu0
        %v1413 = vadd.f32 %v1316, %v1412
        %v1414 = vpop.f32.mrb[0].mxu0
        %v1415 = vpop.f32.mrb[0].mxu0
        %v1416 = vadd.f32 %v1319, %v1415
        %v1417 = vpop.f32.mrb[0].mxu0
        %1418 = vmatprep.mubr.bf16.mxu0 %v744
        %1419 = vmatmul.mubr.bf16.gmra.mrb[0].mxu0 %v743
        %v1420 = vpop.f32.mrb[0].mxu0
        %v1421 = vadd.f32 %v1324, %v1420
        %v1422 = vpop.f32.mrb[0].mxu0
        %v1423 = vpop.f32.mrb[0].mxu0
        %v1424 = vadd.f32 %v1327, %v1423
        %v1425 = vpop.f32.mrb[0].mxu0
        %1426 = vmatprep.mubr.bf16.mxu0 %v751
        %1427 = vmatmul.mubr.bf16.gmra.mrb[0].mxu0 %v750
        %v1428 = vpop.f32.mrb[0].mxu0
        %v1429 = vadd.f32 %v1332, %v1428
        %v1430 = vpop.f32.mrb[0].mxu0
        %v1431 = vpop.f32.mrb[0].mxu0
        %v1432 = vadd.f32 %v1335, %v1431
        %v1433 = vpop.f32.mrb[0].mxu0
        %1434 = vmatprep.mubr.bf16.mxu0 %v758
        %1435 = vmatmul.mubr.bf16.gmra.mrb[0].mxu0 %v757
        %v1436 = vpop.f32.mrb[0].mxu0
        %v1437 = vadd.f32 %v1340, %v1436
        %v1438 = vpop.f32.mrb[0].mxu0
        %v1439 = vpop.f32.mrb[0].mxu0
        %v1440 = vadd.f32 %v1343, %v1439
        %v1441 = vpop.f32.mrb[0].mxu0
        %1442 = vdwg.mxu0
        %1443 = vmatprep.subr.bf16.mxu0 0
        %1444 = vmatpush1.bf16.msra.mxu0 %v1088
        %1445 = vmatprep.subr.bf16.mxu0 0
        %1446 = vmatpush1.bf16.msra.mxu0 %v1089
        %1447 = vmatprep.subr.bf16.mxu0 0
        %1448 = vmatpush1.bf16.msra.mxu0 %v1090
        %1449 = vmatprep.subr.bf16.mxu0 0
        %1450 = vmatpush1.bf16.msra.mxu0 %v1091
        %1451 = vmatprep.subr.bf16.mxu0 0
        %1452 = vmatpush1.bf16.msra.mxu0 %v1092
        %1453 = vmatprep.subr.bf16.mxu0 0
        %1454 = vmatpush1.bf16.msra.mxu0 %v1093
        %1455 = vmatprep.subr.bf16.mxu0 0
        %1456 = vmatpush1.bf16.msra.mxu0 %v1094
        %1457 = vmatprep.subr.bf16.mxu0 0
        %1458 = vmatpush1.bf16.msra.mxu0 %v1095
        %1459 = vmatprep.subr.bf16.mxu0 0
        %1460 = vmatpush1.bf16.msra.mxu0 0
        %1461 = vmatprep.subr.bf16.mxu0 0
        %1462 = vmatpush1.bf16.msra.mxu0 0
        %1463 = vmatprep.subr.bf16.mxu0 0
        %1464 = vmatpush1.bf16.msra.mxu0 0
        %1465 = vmatprep.subr.bf16.mxu0 0
        %1466 = vmatpush1.bf16.msra.mxu0 0
        %1467 = vmatprep.subr.bf16.mxu0 0
        %1468 = vmatpush1.bf16.msra.mxu0 0
        %1469 = vmatprep.subr.bf16.mxu0 0
        %1470 = vmatpush1.bf16.msra.mxu0 0
        %1471 = vmatprep.subr.bf16.mxu0 0
        %1472 = vmatpush1.bf16.msra.mxu0 0
        %1473 = vmatprep.subr.bf16.mxu0 0
        %1474 = vmatpush1.bf16.msra.mxu0 0
        %1475 = vmatprep.mubr.bf16.mxu0 0
        %1476 = vmatmul.mubr.bf16.gmra.mrb[0].mxu0 %v710
        %v1477 = vpop.f32.mrb[0].mxu0
        %v1478 = vadd.f32 %v1381, %v1477
        %v1479 = vpop.f32.mrb[0].mxu0
        %v1480 = vpop.f32.mrb[0].mxu0
        %v1481 = vadd.f32 %v1384, %v1480
        %v1482 = vpop.f32.mrb[0].mxu0
        %1483 = vmatprep.mubr.bf16.mxu0 0
        %1484 = vmatmul.mubr.bf16.gmra.mrb[0].mxu0 %v717
        %v1485 = vpop.f32.mrb[0].mxu0
        %v1486 = vadd.f32 %v1389, %v1485
        %v1487 = vpop.f32.mrb[0].mxu0
        %v1488 = vpop.f32.mrb[0].mxu0
        %v1489 = vadd.f32 %v1392, %v1488
        %v1490 = vpop.f32.mrb[0].mxu0
        %1491 = vmatprep.mubr.bf16.mxu0 0
        %1492 = vmatmul.mubr.bf16.gmra.mrb[0].mxu0 %v724
        %v1493 = vpop.f32.mrb[0].mxu0
        %v1494 = vadd.f32 %v1397, %v1493
        %v1495 = vpop.f32.mrb[0].mxu0
        %v1496 = vpop.f32.mrb[0].mxu0
        %v1497 = vadd.f32 %v1400, %v1496
        %v1498 = vpop.f32.mrb[0].mxu0
        %1499 = vmatprep.mubr.bf16.mxu0 0
        %1500 = vmatmul.mubr.bf16.gmra.mrb[0].mxu0 %v731
        %v1501 = vpop.f32.mrb[0].mxu0
        %v1502 = vadd.f32 %v1405, %v1501
        %v1503 = vpop.f32.mrb[0].mxu0
        %v1504 = vpop.f32.mrb[0].mxu0
        %v1505 = vadd.f32 %v1408, %v1504
        %v1506 = vpop.f32.mrb[0].mxu0
        %1507 = vmatprep.mubr.bf16.mxu0 0
        %1508 = vmatmul.mubr.bf16.gmra.mrb[0].mxu0 %v738
        %v1509 = vpop.f32.mrb[0].mxu0
        %v1510 = vadd.f32 %v1413, %v1509
        %v1511 = vpop.f32.mrb[0].mxu0
        %v1512 = vpop.f32.mrb[0].mxu0
        %v1513 = vadd.f32 %v1416, %v1512
        %v1514 = vpop.f32.mrb[0].mxu0
        %1515 = vmatprep.mubr.bf16.mxu0 0
        %1516 = vmatmul.mubr.bf16.gmra.mrb[0].mxu0 %v745
        %v1517 = vpop.f32.mrb[0].mxu0
        %v1518 = vadd.f32 %v1421, %v1517
        %v1519 = vpop.f32.mrb[0].mxu0
        %v1520 = vpop.f32.mrb[0].mxu0
        %v1521 = vadd.f32 %v1424, %v1520
        %v1522 = vpop.f32.mrb[0].mxu0
        %1523 = vmatprep.mubr.bf16.mxu0 0
        %1524 = vmatmul.mubr.bf16.gmra.mrb[0].mxu0 %v752
        %v1525 = vpop.f32.mrb[0].mxu0
        %v1526 = vadd.f32 %v1429, %v1525
        %v1527 = vpop.f32.mrb[0].mxu0
        %v1528 = vpop.f32.mrb[0].mxu0
        %v1529 = vadd.f32 %v1432, %v1528
        %v1530 = vpop.f32.mrb[0].mxu0
        %1531 = vmatprep.mubr.bf16.mxu0 0
        %1532 = vmatmul.mubr.bf16.gmra.mrb[0].mxu0 %v759
        %v1533 = vpop.f32.mrb[0].mxu0
        %v1534 = vadd.f32 %v1437, %v1533
        %v1535 = vpop.f32.mrb[0].mxu0
        %v1536 = vpop.f32.mrb[0].mxu0
        %v1537 = vadd.f32 %v1440, %v1536
        %v1538 = vpop.f32.mrb[0].mxu0
        %1539 = vdwg.mxu0
        %v1540 = vmax.f32 %v1478, 0.0
        %v1541 = vmax.f32 %v1481, 0.0
        %v1542 = vmax.f32 %v1486, 0.0
        %v1543 = vmax.f32 %v1489, 0.0
        %v1544 = vmax.f32 %v1494, 0.0
        %v1545 = vmax.f32 %v1497, 0.0
        %v1546 = vmax.f32 %v1502, 0.0
        %v1547 = vmax.f32 %v1505, 0.0
        %v1548 = vmax.f32 %v1510, 0.0
        %v1549 = vmax.f32 %v1513, 0.0
        %v1550 = vmax.f32 %v1518, 0.0
        %v1551 = vmax.f32 %v1521, 0.0
        %v1552 = vmax.f32 %v1526, 0.0
        %v1553 = vmax.f32 %v1529, 0.0
        %v1554 = vmax.f32 %v1534, 0.0
        %v1555 = vmax.f32 %v1537, 0.0
        %v1556 = vpack.c.bf16 %v1541, %v1540
        %v1557 = vpack.c.bf16 %v1543, %v1542
        %v1558 = vpack.c.bf16 %v1545, %v1544
        %v1559 = vpack.c.bf16 %v1547, %v1546
        %v1560 = vpack.c.bf16 %v1549, %v1548
        %v1561 = vpack.c.bf16 %v1551, %v1550
        %v1562 = vpack.c.bf16 %v1553, %v1552
        %v1563 = vpack.c.bf16 %v1555, %v1554
        %v1564 = vld [vmem:[#allocation7] sm:$0xf]
        %v1565 = vld [vmem:[#allocation7 + $0x4] sm:$0xf]
        %v1566 = vld [vmem:[#allocation7 + $0x8] sm:$0xf]
        %v1567 = vld [vmem:[#allocation7 + $0xc] sm:$0xf]
        %v1568 = vld [vmem:[#allocation7 + $0x10] sm:$0xf]
        %v1569 = vld [vmem:[#allocation7 + $0x14] sm:$0xf]
        %v1570 = vld [vmem:[#allocation7 + $0x18] sm:$0xf]
        %v1571 = vld [vmem:[#allocation7 + $0x1c] sm:$0xf]
        %v1572 = vld [vmem:[#allocation7 + $0x20] sm:$0xf]
        %v1573 = vld [vmem:[#allocation7 + $0x24] sm:$0xf]
        %v1574 = vld [vmem:[#allocation7 + $0x28] sm:$0xf]
        %v1575 = vld [vmem:[#allocation7 + $0x2c] sm:$0xf]
        %v1576 = vld [vmem:[#allocation7 + $0x30] sm:$0xf]
        %v1577 = vld [vmem:[#allocation7 + $0x34] sm:$0xf]
        %v1578 = vld [vmem:[#allocation7 + $0x38] sm:$0xf]
        %v1579 = vld [vmem:[#allocation7 + $0x3c] sm:$0xf]
        %v1580 = vld [vmem:[%s4] sm:$0x1]
        %v1582 = vlaneseq
        %v1583 = vshrl.u32 %v1582, 7
        %v1584 = vsub.s32 0, %v1583
        %v1585 = vrot.slane %v1580, %v1584
        %v1603 = vunpack.c.l.b16 %v1564
        %v1604 = vunpack.c.l.b16 %v1565
        %v1605 = vunpack.c.l.b16 %v1566
        %v1606 = vunpack.c.l.b16 %v1567
        %v1607 = vunpack.c.l.b16 %v1568
        %v1608 = vunpack.c.l.b16 %v1569
        %v1609 = vunpack.c.l.b16 %v1570
        %v1610 = vunpack.c.l.b16 %v1571
        %v1611 = vunpack.c.l.b16 %v1572
        %v1612 = vunpack.c.l.b16 %v1573
        %v1613 = vunpack.c.l.b16 %v1574
        %v1614 = vunpack.c.l.b16 %v1575
        %v1615 = vunpack.c.l.b16 %v1576
        %v1616 = vunpack.c.l.b16 %v1577
        %v1617 = vunpack.c.l.b16 %v1578
        %v1618 = vunpack.c.l.b16 %v1579
        %v1619 = vpack.c.b16 %v1604, %v1603
        %v1620 = vpack.c.b16 %v1606, %v1605
        %v1621 = vpack.c.b16 %v1608, %v1607
        %v1622 = vpack.c.b16 %v1610, %v1609
        %v1623 = vpack.c.b16 %v1612, %v1611
        %v1624 = vpack.c.b16 %v1614, %v1613
        %v1625 = vpack.c.b16 %v1616, %v1615
        %v1626 = vpack.c.b16 %v1618, %v1617
        %1635 = vmatprep.subr.bf16.mxu0 0
        %1636 = vmatpush1.bf16.msra.mxu0 %v1619
        %1637 = vmatprep.subr.bf16.mxu0 0
        %1638 = vmatpush1.bf16.msra.mxu0 %v1620
        %1639 = vmatprep.subr.bf16.mxu0 0
        %1640 = vmatpush1.bf16.msra.mxu0 %v1621
        %1641 = vmatprep.subr.bf16.mxu0 0
        %1642 = vmatpush1.bf16.msra.mxu0 %v1622
        %1643 = vmatprep.subr.bf16.mxu0 0
        %1644 = vmatpush1.bf16.msra.mxu0 %v1623
        %1645 = vmatprep.subr.bf16.mxu0 0
        %1646 = vmatpush1.bf16.msra.mxu0 %v1624
        %1647 = vmatprep.subr.bf16.mxu0 0
        %1648 = vmatpush1.bf16.msra.mxu0 %v1625
        %1649 = vmatprep.subr.bf16.mxu0 0
        %1650 = vmatpush1.bf16.msra.mxu0 %v1626
        %1651 = vmatprep.subr.bf16.mxu0 0
        %1652 = vmatpush1.bf16.msra.mxu0 0
        %1653 = vmatprep.subr.bf16.mxu0 0
        %1654 = vmatpush1.bf16.msra.mxu0 0
        %1655 = vmatprep.subr.bf16.mxu0 0
        %1656 = vmatpush1.bf16.msra.mxu0 0
        %1657 = vmatprep.subr.bf16.mxu0 0
        %1658 = vmatpush1.bf16.msra.mxu0 0
        %1659 = vmatprep.subr.bf16.mxu0 0
        %1660 = vmatpush1.bf16.msra.mxu0 0
        %1661 = vmatprep.subr.bf16.mxu0 0
        %1662 = vmatpush1.bf16.msra.mxu0 0
        %1663 = vmatprep.subr.bf16.mxu0 0
        %1664 = vmatpush1.bf16.msra.mxu0 0
        %1665 = vmatprep.subr.bf16.mxu0 0
        %1666 = vmatpush1.bf16.msra.mxu0 0
        %1667 = vmatprep.mubr.bf16.mxu0 0
        %1668 = vmatmul.mubr.bf16.gmra.mrb[0].mxu0 %v1556
        %v1669 = vpop.f32.mrb[0].mxu0
        %v1670 = vadd.f32 %v1585, %v1669
        %v1671 = vpop.f32.mrb[0].mxu0
        %v1672 = vpop.f32.mrb[0].mxu0
        %v1673 = vadd.f32 %v1585, %v1672
        %v1674 = vpop.f32.mrb[0].mxu0
        %1675 = vmatprep.mubr.bf16.mxu0 0
        %1676 = vmatmul.mubr.bf16.gmra.mrb[0].mxu0 %v1557
        %v1677 = vpop.f32.mrb[0].mxu0
        %v1678 = vadd.f32 %v1585, %v1677
        %v1679 = vpop.f32.mrb[0].mxu0
        %v1680 = vpop.f32.mrb[0].mxu0
        %v1681 = vadd.f32 %v1585, %v1680
        %v1682 = vpop.f32.mrb[0].mxu0
        %1683 = vmatprep.mubr.bf16.mxu0 0
        %1684 = vmatmul.mubr.bf16.gmra.mrb[0].mxu0 %v1558
        %v1685 = vpop.f32.mrb[0].mxu0
        %v1686 = vadd.f32 %v1585, %v1685
        %v1687 = vpop.f32.mrb[0].mxu0
        %v1688 = vpop.f32.mrb[0].mxu0
        %v1689 = vadd.f32 %v1585, %v1688
        %v1690 = vpop.f32.mrb[0].mxu0
        %1691 = vmatprep.mubr.bf16.mxu0 0
        %1692 = vmatmul.mubr.bf16.gmra.mrb[0].mxu0 %v1559
        %v1693 = vpop.f32.mrb[0].mxu0
        %v1694 = vadd.f32 %v1585, %v1693
        %v1695 = vpop.f32.mrb[0].mxu0
        %v1696 = vpop.f32.mrb[0].mxu0
        %v1697 = vadd.f32 %v1585, %v1696
        %v1698 = vpop.f32.mrb[0].mxu0
        %1699 = vmatprep.mubr.bf16.mxu0 0
        %1700 = vmatmul.mubr.bf16.gmra.mrb[0].mxu0 %v1560
        %v1701 = vpop.f32.mrb[0].mxu0
        %v1702 = vadd.f32 %v1585, %v1701
        %v1703 = vpop.f32.mrb[0].mxu0
        %v1704 = vpop.f32.mrb[0].mxu0
        %v1705 = vadd.f32 %v1585, %v1704
        %v1706 = vpop.f32.mrb[0].mxu0
        %1707 = vmatprep.mubr.bf16.mxu0 0
        %1708 = vmatmul.mubr.bf16.gmra.mrb[0].mxu0 %v1561
        %v1709 = vpop.f32.mrb[0].mxu0
        %v1710 = vadd.f32 %v1585, %v1709
        %v1711 = vpop.f32.mrb[0].mxu0
        %v1712 = vpop.f32.mrb[0].mxu0
        %v1713 = vadd.f32 %v1585, %v1712
        %v1714 = vpop.f32.mrb[0].mxu0
        %1715 = vmatprep.mubr.bf16.mxu0 0
        %1716 = vmatmul.mubr.bf16.gmra.mrb[0].mxu0 %v1562
        %v1717 = vpop.f32.mrb[0].mxu0
        %v1718 = vadd.f32 %v1585, %v1717
        %v1719 = vpop.f32.mrb[0].mxu0
        %v1720 = vpop.f32.mrb[0].mxu0
        %v1721 = vadd.f32 %v1585, %v1720
        %v1722 = vpop.f32.mrb[0].mxu0
        %1723 = vmatprep.mubr.bf16.mxu0 0
        %1724 = vmatmul.mubr.bf16.gmra.mrb[0].mxu0 %v1563
        %v1725 = vpop.f32.mrb[0].mxu0
        %v1726 = vadd.f32 %v1585, %v1725
        %v1727 = vpop.f32.mrb[0].mxu0
        %v1728 = vpop.f32.mrb[0].mxu0
        %v1729 = vadd.f32 %v1585, %v1728
        %v1730 = vpop.f32.mrb[0].mxu0
        %1731 = vdwg.mxu0
        %v1732 = vmax.f32 %v1670, 0.0
        %v1733 = vmax.f32 %v1673, 0.0
        %v1734 = vmax.f32 %v1678, 0.0
        %v1735 = vmax.f32 %v1681, 0.0
        %v1736 = vmax.f32 %v1686, 0.0
        %v1737 = vmax.f32 %v1689, 0.0
        %v1738 = vmax.f32 %v1694, 0.0
        %v1739 = vmax.f32 %v1697, 0.0
        %v1740 = vmax.f32 %v1702, 0.0
        %v1741 = vmax.f32 %v1705, 0.0
        %v1742 = vmax.f32 %v1710, 0.0
        %v1743 = vmax.f32 %v1713, 0.0
        %v1744 = vmax.f32 %v1718, 0.0
        %v1745 = vmax.f32 %v1721, 0.0
        %v1746 = vmax.f32 %v1726, 0.0
        %v1747 = vmax.f32 %v1729, 0.0
        %v1748 = vpack.c.bf16 %v1733, %v1732
        %v1749 = vpack.c.bf16 %v1735, %v1734
        %v1750 = vpack.c.bf16 %v1737, %v1736
        %v1751 = vpack.c.bf16 %v1739, %v1738
        %v1752 = vpack.c.bf16 %v1741, %v1740
        %v1753 = vpack.c.bf16 %v1743, %v1742
        %v1754 = vpack.c.bf16 %v1745, %v1744
        %v1755 = vpack.c.bf16 %v1747, %v1746
        %v1756 = vld [vmem:[#allocation8] sm:$0xf]
        %v1757 = vld [vmem:[#allocation8 + $0x4] sm:$0xf]
        %v1758 = vld [vmem:[#allocation8 + $0x8] sm:$0xf]
        %v1759 = vld [vmem:[#allocation8 + $0xc] sm:$0xf]
        %v1760 = vld [vmem:[#allocation8 + $0x10] sm:$0xf]
        %v1761 = vld [vmem:[#allocation8 + $0x14] sm:$0xf]
        %v1762 = vld [vmem:[#allocation8 + $0x18] sm:$0xf]
        %v1763 = vld [vmem:[#allocation8 + $0x1c] sm:$0xf]
        %v1764 = vld [vmem:[#allocation8 + $0x20] sm:$0xf]
        %v1765 = vld [vmem:[#allocation8 + $0x24] sm:$0xf]
        %v1766 = vld [vmem:[#allocation8 + $0x28] sm:$0xf]
        %v1767 = vld [vmem:[#allocation8 + $0x2c] sm:$0xf]
        %v1768 = vld [vmem:[#allocation8 + $0x30] sm:$0xf]
        %v1769 = vld [vmem:[#allocation8 + $0x34] sm:$0xf]
        %v1770 = vld [vmem:[#allocation8 + $0x38] sm:$0xf]
        %v1771 = vld [vmem:[#allocation8 + $0x3c] sm:$0xf]
        %v1772 = vld [vmem:[%s6] sm:$0x1]
        %v1774 = vlaneseq
        %v1775 = vshrl.u32 %v1774, 7
        %v1776 = vsub.s32 0, %v1775
        %v1777 = vrot.slane %v1772, %v1776
        %v1795 = vunpack.c.l.b16 %v1756
        %v1796 = vunpack.c.l.b16 %v1757
        %v1797 = vunpack.c.l.b16 %v1758
        %v1798 = vunpack.c.l.b16 %v1759
        %v1799 = vunpack.c.l.b16 %v1760
        %v1800 = vunpack.c.l.b16 %v1761
        %v1801 = vunpack.c.l.b16 %v1762
        %v1802 = vunpack.c.l.b16 %v1763
        %v1803 = vunpack.c.l.b16 %v1764
        %v1804 = vunpack.c.l.b16 %v1765
        %v1805 = vunpack.c.l.b16 %v1766
        %v1806 = vunpack.c.l.b16 %v1767
        %v1807 = vunpack.c.l.b16 %v1768
        %v1808 = vunpack.c.l.b16 %v1769
        %v1809 = vunpack.c.l.b16 %v1770
        %v1810 = vunpack.c.l.b16 %v1771
        %v1811 = vpack.c.b16 %v1796, %v1795
        %v1812 = vpack.c.b16 %v1798, %v1797
        %v1813 = vpack.c.b16 %v1800, %v1799
        %v1814 = vpack.c.b16 %v1802, %v1801
        %v1815 = vpack.c.b16 %v1804, %v1803
        %v1816 = vpack.c.b16 %v1806, %v1805
        %v1817 = vpack.c.b16 %v1808, %v1807
        %v1818 = vpack.c.b16 %v1810, %v1809
        %1827 = vmatprep.subr.bf16.mxu0 0
        %1828 = vmatpush1.bf16.msra.mxu0 %v1811
        %1829 = vmatprep.subr.bf16.mxu0 0
        %1830 = vmatpush1.bf16.msra.mxu0 %v1812
        %1831 = vmatprep.subr.bf16.mxu0 0
        %1832 = vmatpush1.bf16.msra.mxu0 %v1813
        %1833 = vmatprep.subr.bf16.mxu0 0
        %1834 = vmatpush1.bf16.msra.mxu0 %v1814
        %1835 = vmatprep.subr.bf16.mxu0 0
        %1836 = vmatpush1.bf16.msra.mxu0 %v1815
        %1837 = vmatprep.subr.bf16.mxu0 0
        %1838 = vmatpush1.bf16.msra.mxu0 %v1816
        %1839 = vmatprep.subr.bf16.mxu0 0
        %1840 = vmatpush1.bf16.msra.mxu0 %v1817
        %1841 = vmatprep.subr.bf16.mxu0 0
        %1842 = vmatpush1.bf16.msra.mxu0 %v1818
        %1843 = vmatprep.subr.bf16.mxu0 0
        %1844 = vmatpush1.bf16.msra.mxu0 0
        %1845 = vmatprep.subr.bf16.mxu0 0
        %1846 = vmatpush1.bf16.msra.mxu0 0
        %1847 = vmatprep.subr.bf16.mxu0 0
        %1848 = vmatpush1.bf16.msra.mxu0 0
        %1849 = vmatprep.subr.bf16.mxu0 0
        %1850 = vmatpush1.bf16.msra.mxu0 0
        %1851 = vmatprep.subr.bf16.mxu0 0
        %1852 = vmatpush1.bf16.msra.mxu0 0
        %1853 = vmatprep.subr.bf16.mxu0 0
        %1854 = vmatpush1.bf16.msra.mxu0 0
        %1855 = vmatprep.subr.bf16.mxu0 0
        %1856 = vmatpush1.bf16.msra.mxu0 0
        %1857 = vmatprep.subr.bf16.mxu0 0
        %1858 = vmatpush1.bf16.msra.mxu0 0
        %1859 = vmatprep.mubr.bf16.mxu0 0
        %1860 = vmatmul.mubr.bf16.gmra.mrb[0].mxu0 %v1748
        %v1861 = vpop.f32.mrb[0].mxu0
        %v1862 = vadd.f32 %v1777, %v1861
        %v1863 = vpop.f32.mrb[0].mxu0
        %v1864 = vpop.f32.mrb[0].mxu0
        %v1865 = vadd.f32 %v1777, %v1864
        %v1866 = vpop.f32.mrb[0].mxu0
        %1867 = vmatprep.mubr.bf16.mxu0 0
        %1868 = vmatmul.mubr.bf16.gmra.mrb[0].mxu0 %v1749
        %v1869 = vpop.f32.mrb[0].mxu0
        %v1870 = vadd.f32 %v1777, %v1869
        %v1871 = vpop.f32.mrb[0].mxu0
        %v1872 = vpop.f32.mrb[0].mxu0
        %v1873 = vadd.f32 %v1777, %v1872
        %v1874 = vpop.f32.mrb[0].mxu0
        %1875 = vmatprep.mubr.bf16.mxu0 0
        %1876 = vmatmul.mubr.bf16.gmra.mrb[0].mxu0 %v1750
        %v1877 = vpop.f32.mrb[0].mxu0
        %v1878 = vadd.f32 %v1777, %v1877
        %v1879 = vpop.f32.mrb[0].mxu0
        %v1880 = vpop.f32.mrb[0].mxu0
        %v1881 = vadd.f32 %v1777, %v1880
        %v1882 = vpop.f32.mrb[0].mxu0
        %1883 = vmatprep.mubr.bf16.mxu0 0
        %1884 = vmatmul.mubr.bf16.gmra.mrb[0].mxu0 %v1751
        %v1885 = vpop.f32.mrb[0].mxu0
        %v1886 = vadd.f32 %v1777, %v1885
        %v1887 = vpop.f32.mrb[0].mxu0
        %v1888 = vpop.f32.mrb[0].mxu0
        %v1889 = vadd.f32 %v1777, %v1888
        %v1890 = vpop.f32.mrb[0].mxu0
        %1891 = vmatprep.mubr.bf16.mxu0 0
        %1892 = vmatmul.mubr.bf16.gmra.mrb[0].mxu0 %v1752
        %v1893 = vpop.f32.mrb[0].mxu0
        %v1894 = vadd.f32 %v1777, %v1893
        %v1895 = vpop.f32.mrb[0].mxu0
        %v1896 = vpop.f32.mrb[0].mxu0
        %v1897 = vadd.f32 %v1777, %v1896
        %v1898 = vpop.f32.mrb[0].mxu0
        %1899 = vmatprep.mubr.bf16.mxu0 0
        %1900 = vmatmul.mubr.bf16.gmra.mrb[0].mxu0 %v1753
        %v1901 = vpop.f32.mrb[0].mxu0
        %v1902 = vadd.f32 %v1777, %v1901
        %v1903 = vpop.f32.mrb[0].mxu0
        %v1904 = vpop.f32.mrb[0].mxu0
        %v1905 = vadd.f32 %v1777, %v1904
        %v1906 = vpop.f32.mrb[0].mxu0
        %1907 = vmatprep.mubr.bf16.mxu0 0
        %1908 = vmatmul.mubr.bf16.gmra.mrb[0].mxu0 %v1754
        %v1909 = vpop.f32.mrb[0].mxu0
        %v1910 = vadd.f32 %v1777, %v1909
        %v1911 = vpop.f32.mrb[0].mxu0
        %v1912 = vpop.f32.mrb[0].mxu0
        %v1913 = vadd.f32 %v1777, %v1912
        %v1914 = vpop.f32.mrb[0].mxu0
        %1915 = vmatprep.mubr.bf16.mxu0 0
        %1916 = vmatmul.mubr.bf16.gmra.mrb[0].mxu0 %v1755
        %v1917 = vpop.f32.mrb[0].mxu0
        %v1918 = vadd.f32 %v1777, %v1917
        %v1919 = vpop.f32.mrb[0].mxu0
        %v1920 = vpop.f32.mrb[0].mxu0
        %v1921 = vadd.f32 %v1777, %v1920
        %v1922 = vpop.f32.mrb[0].mxu0
        %1923 = vdwg.mxu0
        %1924 = vst [vmem:[%s341] sm:$0xff] %v1862
        %1925 = vst [vmem:[%s341 + $0x8] sm:$0xff] %v1865
        %1926 = vst [vmem:[%s341 + $0x10] sm:$0xff] %v1870
        %1927 = vst [vmem:[%s341 + $0x18] sm:$0xff] %v1873
        %1928 = vst [vmem:[%s341 + $0x20] sm:$0xff] %v1878
        %1929 = vst [vmem:[%s341 + $0x28] sm:$0xff] %v1881
        %1930 = vst [vmem:[%s341 + $0x30] sm:$0xff] %v1886
        %1931 = vst [vmem:[%s341 + $0x38] sm:$0xff] %v1889
        %1932 = vst [vmem:[%s341 + $0x40] sm:$0xff] %v1894
        %1933 = vst [vmem:[%s341 + $0x48] sm:$0xff] %v1897
        %1934 = vst [vmem:[%s341 + $0x50] sm:$0xff] %v1902
        %1935 = vst [vmem:[%s341 + $0x58] sm:$0xff] %v1905
        %1936 = vst [vmem:[%s341 + $0x60] sm:$0xff] %v1910
        %1937 = vst [vmem:[%s341 + $0x68] sm:$0xff] %v1913
        %1938 = vst [vmem:[%s341 + $0x70] sm:$0xff] %v1918
        %1939 = vst [vmem:[%s341 + $0x78] sm:$0xff] %v1921
        %s1940 = sand.u32 %s186, 1
        %s1941 = scalar_lea.sflag [#allocation4], %s1940
        %s1942 = sand.u32 %s186, 1
        %s1943 = smul.addr %s1942, 128
        %s1944 = scalar_lea.vmem [#allocation10], %s1943
        // Predicated region
        $region65: #{tpu_custom_call.1} parent=47 // pred_check
          %p1945 = pneg %p196
        $region66: #{tpu_custom_call.1} parent=47 // pred_check_branch
          %1947 = sbr.rel (%p1945) target = $region68
        $region67: #{tpu_custom_call.1} parent=47 // pred_region
          %s1948 = smul.u32 16, %s26
          %s1950 = ssub.s32 2048, 2048
          %1951 = vsyncadd %s1941, %s1950
          %s1952 = smul.addr %s1948, 128
          %s1953 = scalar_lea.hbm %s7, %s1952
          %s1954 = sshll.u32 %s1944, 4
          %s1955 = int_to_ptr.vmem [resolvable:$true] %s1954
          %1960 = dma.vmem_to_hbm [thread:$0]  %s1955, 2048, %s1953, %s1941, 128, 128, 8
        $region68: #{tpu_custom_call.1} parent=47 // pred_fallthru
          _
      $region48: #{tpu_custom_call.1} parent=5 // pred_fallthru
        _
      %p1961 = scmp.le.s32.totalorder 2, %s21
      // Predicated region
      $region69: #{tpu_custom_call.1} parent=5 // pred_check
        %p1962 = pneg %p1961
      $region70: #{tpu_custom_call.1} parent=5 // pred_check_branch
        %1964 = sbr.rel (%p1962) target = $region72
      $region71: #{tpu_custom_call.1} parent=5 // pred_region
        %s1965 = ssub.s32 %s21, 2
        // Predicated region
        $region73: #{tpu_custom_call.1} parent=71 // pred_check
          %p1966 = pneg %p202
        $region74: #{tpu_custom_call.1} parent=71 // pred_check_branch
          %1968 = sbr.rel (%p1966) target = $region76
        $region75: #{tpu_custom_call.1} parent=71 // pred_region
          %s1969 = sand.u32 %s187, 1
          %s1970 = scalar_lea.sflag [#allocation4], %s1969
          %s1971 = sand.u32 %s187, 1
          %s1972 = smul.addr %s1971, 128
          %s1973 = scalar_lea.vmem [#allocation10], %s1972
          %1974 = dma.done %s1970, 2048
        $region76: #{tpu_custom_call.1} parent=71 // pred_fallthru
          _
      $region72: #{tpu_custom_call.1} parent=5 // pred_fallthru
        _
    $region6: #{tpu_custom_call.1} parent=1 // loop_footer
      %s25 = sadd.s32 1, %s21
    $region7: #{tpu_custom_call.1} parent=1 // loop_footer_branch
      %20 = sbr.rel target = $region3
    $region8: #{tpu_custom_call.1} parent=1 // loop_exit
      _
    %1975 = vsyncpa [#allocation3], 1
    %s1976 = scalar_lea.sflag [#allocation3], 1
    %1977 = vsyncpa %s1976, 1
    %1978 = vsyncpa [#allocation6], 1
    %1979 = vsyncpa [#allocation9], 1
    %1980 = vsyncpa [#allocation4], 1
    %s1981 = scalar_lea.sflag [#allocation4], 1
    %1982 = vsyncpa %s1981, 1

</llo_original>
